<compile_context>
chip_gen: v7x
topology: tpu7x:2x2x1
jax: 0.10.0
libtpu: 0.0.40
codegen_flags: <defaults>
</compile_context>

<pallas_src>
import functools

import jax
import jax.numpy as jnp
from jax.experimental import pallas as pl
from jax.experimental.pallas import tpu as pltpu

LANE = 128
HIDDEN = 512


def _autoencoder_kernel(x_ref,
                        w1_ref, b1_ref,
                        w2_ref, b2_ref,
                        w3_ref, b3_ref,
                        w4_ref, b4_ref,
                        out_ref):
    """Fused encoder/decoder MLP on one batch tile.

    encoder: relu(x @ W1 + b1) -> relu(. @ W2 + b2)
    decoder: relu(. @ W3 + b3) -> tanh(. @ W4 + b4)

    Matmul operands are bf16 (or f32); accumulation and all elementwise math
    (bias add / ReLU / tanh) stay f32.
    """
    cdt = w1_ref.dtype  # compute dtype of the MXU operands

    # Fused input cast (feedback item 1): VPU op, hidden under DMA/MXU.
    x = x_ref[...].astype(cdt)

    h1 = jnp.dot(x, w1_ref[...],
                 preferred_element_type=jnp.float32) + b1_ref[...]
    h1 = jnp.maximum(h1, 0.0)

    z = jnp.dot(h1.astype(cdt), w2_ref[...],
                preferred_element_type=jnp.float32) + b2_ref[...]
    z = jnp.maximum(z, 0.0)

    h2 = jnp.dot(z.astype(cdt), w3_ref[...],
                 preferred_element_type=jnp.float32) + b3_ref[...]
    h2 = jnp.maximum(h2, 0.0)

    y = jnp.dot(h2.astype(cdt), w4_ref[...],
                preferred_element_type=jnp.float32) + b4_ref[...]
    out_ref[...] = jnp.tanh(y).astype(out_ref.dtype)


def _round_up(n, m):
    return ((n + m - 1) // m) * m


def _tpu_hw_info():
    """(tensorcores_per_chip, physical_vmem_bytes) with conservative fallbacks.

    Fallbacks (1 core, 64 MiB VMEM) are safe on every generation: they only make
    the tile picker more conservative."""
    cores = 1
    vmem = 64 << 20
    try:
        info = pltpu.get_tpu_info()
        vmem = int(getattr(info, "vmem_capacity_bytes", vmem))
    except Exception:
        pass
    try:
        kind = jax.devices()[0].device_kind.lower()
        if "v7" in kind:          # two TensorCores per chip
            cores = 2
    except Exception:
        pass
    return cores, vmem


def _pick_block_b(B, S, H, Lp, *, x_itemsize, out_itemsize, w_itemsize,
                  num_cores, vmem_budget, max_block=2048):
    """Core-count- and traffic-aware batch tile.

    Single-TC chips: one grid step whenever the tile fits the VMEM budget.
    Multi-TC chips:  only split across cores when the per-core activation bytes
    exceed the (duplicated) weight bytes; otherwise one step.
    Tiles are multiples of 16 (bf16 sublane packing) unless they cover the whole
    batch, and always divide B."""
    weight_bytes = (w_itemsize * (S * H + H * Lp + Lp * H + H * S)
                    + 4 * (H + Lp + H + S))
    # per-row VMEM: double-buffered x/out tiles + live f32 intermediates.
    per_row = (2 * S * x_itemsize + 2 * S * out_itemsize
               + 4 * (3 * H + Lp))
    rows_cap = max(16, ((vmem_budget - 2 * weight_bytes) // per_row) // 16 * 16)
    cap = min(max_block, rows_cap)

    act_bytes_per_core = (B // max(num_cores, 1)) * S * (x_itemsize + out_itemsize)
    want_split = (num_cores > 1
                  and B % num_cores == 0
                  and (B // num_cores) >= 128
                  and act_bytes_per_core >= weight_bytes)

    if not want_split and B <= cap:
        return B

    target = min(B // num_cores, cap) if want_split else cap
    for cand in range(int(target), 0, -1):
        if B % cand == 0 and (cand % 16 == 0 or cand == B):
            return cand
    return B  # pathological B (e.g. huge prime): single oversized step


def prepare_params(params, compute_dtype=jnp.bfloat16):
    """Pad the latent dim to a lane-dense multiple of 128 and cast the matmul
    operands to `compute_dtype`.  Biases stay f32.  Zero padding is exact:
    padded z columns are ReLU(0 + 0) = 0 and the padded W3 rows are 0."""
    w1, b1 = params["w1"], params["b1"]
    w2, b2 = params["w2"], params["b2"]
    w3, b3 = params["w3"], params["b3"]
    w4, b4 = params["w4"], params["b4"]

    L = w2.shape[1]
    Lp = max(LANE, _round_up(L, LANE))
    if Lp != L:
        w2 = jnp.pad(w2, ((0, 0), (0, Lp - L)))
        b2 = jnp.pad(b2, ((0, 0), (0, Lp - L)))
        w3 = jnp.pad(w3, ((0, Lp - L), (0, 0)))

    f32 = jnp.float32
    return dict(w1=w1.astype(compute_dtype), b1=b1.astype(f32),
                w2=w2.astype(compute_dtype), b2=b2.astype(f32),
                w3=w3.astype(compute_dtype), b3=b3.astype(f32),
                w4=w4.astype(compute_dtype), b4=b4.astype(f32))


@functools.partial(jax.jit, static_argnames=("block_b", "out_dtype"))
def autoencoder_forward(x, params, *, block_b=None, out_dtype=jnp.float32):
    """x: (B, seq_length) float32.  params: output of prepare_params()."""
    B, S = x.shape
    H = params["w1"].shape[1]
    Lp = params["w2"].shape[1]
    out_itemsize = jnp.dtype(out_dtype).itemsize

    cores, vmem_phys = _tpu_hw_info()
    # Scoped-VMEM limit: generous but always below physical (64 MiB on v7x).
    vmem_limit_bytes = min(int(vmem_phys * 3 // 4), 96 << 20)

    if block_b is None:
        block_b = _pick_block_b(
            B, S, H, Lp,
            x_itemsize=x.dtype.itemsize,
            out_itemsize=out_itemsize,
            w_itemsize=params["w1"].dtype.itemsize,
            num_cores=cores,
            vmem_budget=vmem_limit_bytes // 2)
    assert B % block_b == 0, "batch must be a multiple of block_b"
    grid = (B // block_b,)

    # Weights/biases are grid-invariant (constant block index) -> VMEM-resident.
    w_spec = lambda shape: pl.BlockSpec(shape, lambda i: (0, 0))

    flops = 2 * B * (S * H + H * Lp + Lp * H + H * S)
    bytes_accessed = (
        B * S * x.dtype.itemsize                       # x (cast fused in-kernel)
        + B * S * out_itemsize                         # out
        + sum(int(v.size) * v.dtype.itemsize for v in params.values()))
    cost = pl.CostEstimate(flops=flops,
                           transcendentals=B * S,       # tanh
                           bytes_accessed=bytes_accessed)

    return pl.pallas_call(
        _autoencoder_kernel,
        out_shape=jax.ShapeDtypeStruct((B, S), out_dtype),
        grid_spec=pltpu.PrefetchScalarGridSpec(
            num_scalar_prefetch=0,
            grid=grid,
            in_specs=[
                pl.BlockSpec((block_b, S), lambda i: (i, 0)),   # x tile (f32)
                w_spec((S, H)), w_spec((1, H)),                 # W1, b1
                w_spec((H, Lp)), w_spec((1, Lp)),               # W2, b2 (latent padded)
                w_spec((Lp, H)), w_spec((1, H)),                # W3, b3
                w_spec((H, S)), w_spec((1, S)),                 # W4, b4
            ],
            out_specs=pl.BlockSpec((block_b, S), lambda i: (i, 0)),
        ),
        compiler_params=pltpu.CompilerParams(
            dimension_semantics=("parallel",),
            vmem_limit_bytes=vmem_limit_bytes),
        cost_estimate=cost,
    )(x, params["w1"], params["b1"], params["w2"], params["b2"],
      params["w3"], params["b3"], params["w4"], params["b4"])


def init_params(key, seq_length, latent_dim, hidden=HIDDEN):
    """Deterministic init mimicking nn.Linear's U(-1/sqrt(fan_in), 1/sqrt(fan_in)).

    Weights are stored already transposed to (in, out); biases as (1, out)."""
    def linear(key, fan_in, fan_out):
        kw, kb = jax.random.split(key)
        bound = 1.0 / jnp.sqrt(fan_in)
        w = jax.random.uniform(kw, (fan_in, fan_out), jnp.float32, -bound, bound)
        b = jax.random.uniform(kb, (1, fan_out), jnp.float32, -bound, bound)
        return w, b

    k1, k2, k3, k4 = jax.random.split(key, 4)
    w1, b1 = linear(k1, seq_length, hidden)      # encoder Linear(seq, 512)
    w2, b2 = linear(k2, hidden, latent_dim)      # encoder Linear(512, latent)
    w3, b3 = linear(k3, latent_dim, hidden)      # decoder Linear(latent, 512)
    w4, b4 = linear(k4, hidden, seq_length)      # decoder Linear(512, seq)
    return dict(w1=w1, b1=b1, w2=w2, b2=b2, w3=w3, b3=b3, w4=w4, b4=b4)


def reference_forward(x, p):
    """Pure-f32 JAX reference with the PyTorch module's semantics."""
    h = jax.nn.relu(x @ p["w1"] + p["b1"])
    z = jax.nn.relu(h @ p["w2"] + p["b2"])
    h2 = jax.nn.relu(z @ p["w3"] + p["b3"])
    return jnp.tanh(h2 @ p["w4"] + p["b4"])


def reference_forward_matched(x, pp):
    """JAX reference mirroring the kernel numerics (low-precision matmul
    operands, f32 accumulation and elementwise math, padded latent)."""
    cdt = pp["w1"].dtype

    def mm(a, w):
        return jax.lax.dot(a.astype(cdt), w, preferred_element_type=jnp.float32)

    h = jax.nn.relu(mm(x, pp["w1"]) + pp["b1"])
    z = jax.nn.relu(mm(h, pp["w2"]) + pp["b2"])
    h2 = jax.nn.relu(mm(z, pp["w3"]) + pp["b3"])
    return jnp.tanh(mm(h2, pp["w4"]) + pp["b4"])


if __name__ == "__main__":
    seq_length = 128
    latent_dim = 32
    batch = 256   # single grid step on v5e/v6e, and on v7x (weight-DMA-bound regime)

    key = jax.random.PRNGKey(0)
    kx, kp = jax.random.split(key)
    x = jax.random.normal(kx, (batch, seq_length), dtype=jnp.float32)

    params = init_params(kp, seq_length, latent_dim)             # f32, (in,out) layout
    packed = prepare_params(params, compute_dtype=jnp.bfloat16)  # padded + bf16 weights

    out = autoencoder_forward(x, packed)
    out = jax.block_until_ready(out)
    assert out.shape == (batch, seq_length)

    # 1) tight check vs a reference with matched (bf16-operand, f32-accumulate) numerics
    ref_matched = reference_forward_matched(x, packed)
    assert jnp.allclose(out, ref_matched, atol=2e-3, rtol=2e-3), \
        "mismatch vs matched-precision reference"

    # 2) semantics sanity check vs the full-f32 PyTorch-equivalent reference
    #    (difference is only bf16 rounding of the matmul operands)
    ref_f32 = reference_forward(x, params)
    assert jnp.allclose(out, ref_f32, atol=3e-2, rtol=0.0), \
        "mismatch vs f32 reference"

    # TODO(synk): for a serving loop, keep bf16 weights resident across calls via a
    # cross-pallas_call prefetch (P10) instead of re-DMAing ~0.5 MiB per call.
    print("KERNEL_OK")
</pallas_src>

<mosaic_0001>
module attributes {stable_mosaic.version = 11 : i64} {
  func.func @_autoencoder_kernel(%arg0: i32, %arg1: memref<256x128xf32, #tpu.memory_space<vmem>>, %arg2: memref<128x512xbf16, #tpu.memory_space<vmem>>, %arg3: memref<1x512xf32, #tpu.memory_space<vmem>>, %arg4: memref<512x128xbf16, #tpu.memory_space<vmem>>, %arg5: memref<1x128xf32, #tpu.memory_space<vmem>>, %arg6: memref<128x512xbf16, #tpu.memory_space<vmem>>, %arg7: memref<1x512xf32, #tpu.memory_space<vmem>>, %arg8: memref<512x128xbf16, #tpu.memory_space<vmem>>, %arg9: memref<1x128xf32, #tpu.memory_space<vmem>>, %arg10: memref<256x128xf32, #tpu.memory_space<vmem>>) attributes {dimension_semantics = [#tpu.dimension_semantics<parallel>], iteration_bounds = array<i64: 1>, scalar_prefetch = 0 : i64, scratch_operands = 0 : i64, tpu.core_type = #tpu.core_type<tc>, window_params = [{transform_indices = @transform_0, window_bounds = array<i64: 256, 128>}, {pipeline_mode = #tpu.pipeline_mode<synchronous>, transform_indices = @transform_1, window_bounds = array<i64: 128, 512>}, {pipeline_mode = #tpu.pipeline_mode<synchronous>, transform_indices = @transform_2, window_bounds = array<i64: 1, 512>}, {pipeline_mode = #tpu.pipeline_mode<synchronous>, transform_indices = @transform_3, window_bounds = array<i64: 512, 128>}, {pipeline_mode = #tpu.pipeline_mode<synchronous>, transform_indices = @transform_4, window_bounds = array<i64: 1, 128>}, {pipeline_mode = #tpu.pipeline_mode<synchronous>, transform_indices = @transform_5, window_bounds = array<i64: 128, 512>}, {pipeline_mode = #tpu.pipeline_mode<synchronous>, transform_indices = @transform_6, window_bounds = array<i64: 1, 512>}, {pipeline_mode = #tpu.pipeline_mode<synchronous>, transform_indices = @transform_7, window_bounds = array<i64: 512, 128>}, {pipeline_mode = #tpu.pipeline_mode<synchronous>, transform_indices = @transform_8, window_bounds = array<i64: 1, 128>}, {transform_indices = @transform_9, window_bounds = array<i64: 256, 128>}]} {
    %c0 = arith.constant 0 : index
    %c0_0 = arith.constant 0 : index
    %0 = vector.load %arg1[%c0, %c0_0] : memref<256x128xf32, #tpu.memory_space<vmem>>, vector<256x128xf32>
    %1 = arith.truncf %0 : vector<256x128xf32> to vector<256x128xbf16>
    %c0_1 = arith.constant 0 : index
    %c0_2 = arith.constant 0 : index
    %2 = vector.load %arg2[%c0_1, %c0_2] : memref<128x512xbf16, #tpu.memory_space<vmem>>, vector<128x512xbf16>
    %cst = arith.constant dense<0.000000e+00> : vector<256x512xf32>
    %3 = tpu.matmul %1, %2, %cst {dimension_numbers = #tpu.dot_dimension_numbers<[1], [0], [0], [1], [0, 0, 1, 1], [], []>} : vector<256x128xbf16>, vector<128x512xbf16>, vector<256x512xf32> -> vector<256x512xf32>
    %c0_3 = arith.constant 0 : index
    %c0_4 = arith.constant 0 : index
    %4 = vector.load %arg3[%c0_3, %c0_4] : memref<1x512xf32, #tpu.memory_space<vmem>>, vector<1x512xf32>
    %5 = vector.broadcast %4 : vector<1x512xf32> to vector<256x512xf32>
    %6 = arith.addf %3, %5 : vector<256x512xf32>
    %cst_5 = arith.constant 0.000000e+00 : f32
    %7 = vector.broadcast %cst_5 : f32 to vector<256x512xf32>
    %8 = arith.maximumf %6, %7 : vector<256x512xf32>
    %9 = arith.truncf %8 : vector<256x512xf32> to vector<256x512xbf16>
    %c0_6 = arith.constant 0 : index
    %c0_7 = arith.constant 0 : index
    %10 = vector.load %arg4[%c0_6, %c0_7] : memref<512x128xbf16, #tpu.memory_space<vmem>>, vector<512x128xbf16>
    %cst_8 = arith.constant dense<0.000000e+00> : vector<256x128xf32>
    %11 = tpu.matmul %9, %10, %cst_8 {dimension_numbers = #tpu.dot_dimension_numbers<[1], [0], [0], [1], [0, 0, 1, 1], [], []>} : vector<256x512xbf16>, vector<512x128xbf16>, vector<256x128xf32> -> vector<256x128xf32>
    %c0_9 = arith.constant 0 : index
    %c0_10 = arith.constant 0 : index
    %12 = vector.load %arg5[%c0_9, %c0_10] : memref<1x128xf32, #tpu.memory_space<vmem>>, vector<1x128xf32>
    %13 = vector.broadcast %12 : vector<1x128xf32> to vector<256x128xf32>
    %14 = arith.addf %11, %13 : vector<256x128xf32>
    %cst_11 = arith.constant 0.000000e+00 : f32
    %15 = vector.broadcast %cst_11 : f32 to vector<256x128xf32>
    %16 = arith.maximumf %14, %15 : vector<256x128xf32>
    %17 = arith.truncf %16 : vector<256x128xf32> to vector<256x128xbf16>
    %c0_12 = arith.constant 0 : index
    %c0_13 = arith.constant 0 : index
    %18 = vector.load %arg6[%c0_12, %c0_13] : memref<128x512xbf16, #tpu.memory_space<vmem>>, vector<128x512xbf16>
    %cst_14 = arith.constant dense<0.000000e+00> : vector<256x512xf32>
    %19 = tpu.matmul %17, %18, %cst_14 {dimension_numbers = #tpu.dot_dimension_numbers<[1], [0], [0], [1], [0, 0, 1, 1], [], []>} : vector<256x128xbf16>, vector<128x512xbf16>, vector<256x512xf32> -> vector<256x512xf32>
    %c0_15 = arith.constant 0 : index
    %c0_16 = arith.constant 0 : index
    %20 = vector.load %arg7[%c0_15, %c0_16] : memref<1x512xf32, #tpu.memory_space<vmem>>, vector<1x512xf32>
    %21 = vector.broadcast %20 : vector<1x512xf32> to vector<256x512xf32>
    %22 = arith.addf %19, %21 : vector<256x512xf32>
    %cst_17 = arith.constant 0.000000e+00 : f32
    %23 = vector.broadcast %cst_17 : f32 to vector<256x512xf32>
    %24 = arith.maximumf %22, %23 : vector<256x512xf32>
    %25 = arith.truncf %24 : vector<256x512xf32> to vector<256x512xbf16>
    %c0_18 = arith.constant 0 : index
    %c0_19 = arith.constant 0 : index
    %26 = vector.load %arg8[%c0_18, %c0_19] : memref<512x128xbf16, #tpu.memory_space<vmem>>, vector<512x128xbf16>
    %cst_20 = arith.constant dense<0.000000e+00> : vector<256x128xf32>
    %27 = tpu.matmul %25, %26, %cst_20 {dimension_numbers = #tpu.dot_dimension_numbers<[1], [0], [0], [1], [0, 0, 1, 1], [], []>} : vector<256x512xbf16>, vector<512x128xbf16>, vector<256x128xf32> -> vector<256x128xf32>
    %c0_21 = arith.constant 0 : index
    %c0_22 = arith.constant 0 : index
    %28 = vector.load %arg9[%c0_21, %c0_22] : memref<1x128xf32, #tpu.memory_space<vmem>>, vector<1x128xf32>
    %29 = vector.broadcast %28 : vector<1x128xf32> to vector<256x128xf32>
    %30 = arith.addf %27, %29 : vector<256x128xf32>
    %31 = math.tanh %30 : vector<256x128xf32>
    %c0_23 = arith.constant 0 : index
    %c0_24 = arith.constant 0 : index
    %32 = vector.load %arg10[%c0_23, %c0_24] : memref<256x128xf32, #tpu.memory_space<vmem>>, vector<256x128xf32>
    tpu.vector_store %arg10[%c0_23, %c0_24], %31 {strides = array<i32>} : memref<256x128xf32, #tpu.memory_space<vmem>>, vector<256x128xf32>,
    return
  }
  func.func @transform_0(%arg0: i32) -> (i32, i32) {
    %c0_i32 = arith.constant 0 : i32
    %c0_i32_0 = arith.constant 0 : i32
    return %arg0, %c0_i32 : i32, i32
  }
  func.func @transform_1(%arg0: i32) -> (i32, i32) {
    %c0_i32 = arith.constant 0 : i32
    %c0_i32_0 = arith.constant 0 : i32
    %c0_i32_1 = arith.constant 0 : i32
    return %c0_i32, %c0_i32_0 : i32, i32
  }
  func.func @transform_2(%arg0: i32) -> (i32, i32) {
    %c0_i32 = arith.constant 0 : i32
    %c0_i32_0 = arith.constant 0 : i32
    %c0_i32_1 = arith.constant 0 : i32
    return %c0_i32, %c0_i32_0 : i32, i32
  }
  func.func @transform_3(%arg0: i32) -> (i32, i32) {
    %c0_i32 = arith.constant 0 : i32
    %c0_i32_0 = arith.constant 0 : i32
    %c0_i32_1 = arith.constant 0 : i32
    return %c0_i32, %c0_i32_0 : i32, i32
  }
  func.func @transform_4(%arg0: i32) -> (i32, i32) {
    %c0_i32 = arith.constant 0 : i32
    %c0_i32_0 = arith.constant 0 : i32
    %c0_i32_1 = arith.constant 0 : i32
    return %c0_i32, %c0_i32_0 : i32, i32
  }
  func.func @transform_5(%arg0: i32) -> (i32, i32) {
    %c0_i32 = arith.constant 0 : i32
    %c0_i32_0 = arith.constant 0 : i32
    %c0_i32_1 = arith.constant 0 : i32
    return %c0_i32, %c0_i32_0 : i32, i32
  }
  func.func @transform_6(%arg0: i32) -> (i32, i32) {
    %c0_i32 = arith.constant 0 : i32
    %c0_i32_0 = arith.constant 0 : i32
    %c0_i32_1 = arith.constant 0 : i32
    return %c0_i32, %c0_i32_0 : i32, i32
  }
  func.func @transform_7(%arg0: i32) -> (i32, i32) {
    %c0_i32 = arith.constant 0 : i32
    %c0_i32_0 = arith.constant 0 : i32
    %c0_i32_1 = arith.constant 0 : i32
    return %c0_i32, %c0_i32_0 : i32, i32
  }
  func.func @transform_8(%arg0: i32) -> (i32, i32) {
    %c0_i32 = arith.constant 0 : i32
    %c0_i32_0 = arith.constant 0 : i32
    %c0_i32_1 = arith.constant 0 : i32
    return %c0_i32, %c0_i32_0 : i32, i32
  }
  func.func @transform_9(%arg0: i32) -> (i32, i32) {
    %c0_i32 = arith.constant 0 : i32
    %c0_i32_0 = arith.constant 0 : i32
    return %arg0, %c0_i32 : i32, i32
  }
}

</mosaic_0001>

<llo_original>
// kernel: autoencoder_forward.1
$region0: #{autoencoder_forward.1}
  #allocation0 [shape = 'u32[]', space=smem, size = 0x4, offset = 0x4, fixed_abs, tag = 'smem constant byte address 0x4 - core index']
  #allocation1 [shape = 'u32[144,128]{1,0:T(1,128)}', space=vmem, size = 0x12000, scoped, tag = 'internal scratch']
  %s0 = inlined_call_operand.hbm [shape: f32[256,128], index: 0, kind: input, shape index: {}]
  %s1 = inlined_call_operand.hbm [shape: bf16[128,512], index: 1, kind: input, shape index: {}]
  %s2 = inlined_call_operand.hbm [shape: f32[1,512], index: 2, kind: input, shape index: {}]
  %s3 = inlined_call_operand.hbm [shape: bf16[512,128], index: 3, kind: input, shape index: {}]
  %s4 = inlined_call_operand.vmem [shape: f32[1,128], index: 4, kind: input, shape index: {}]
  %s5 = inlined_call_operand.hbm [shape: bf16[128,512], index: 5, kind: input, shape index: {}]
  %s6 = inlined_call_operand.vmem [shape: f32[1,512], index: 6, kind: input, shape index: {}]
  %s7 = inlined_call_operand.hbm [shape: bf16[512,128], index: 7, kind: input, shape index: {}]
  %s8 = inlined_call_operand.vmem [shape: f32[1,128], index: 8, kind: input, shape index: {}]
  %s9 = inlined_call_operand.hbm [shape: f32[256,128], index: 9, kind: output, shape index: {}]
  %s10 = sld [smem:[#allocation0]]
  $region70: #{autoencoder_forward.1} parent=0
    _
  %s12 = ssub.s32 1, %s10
  %s13 = scalar_select 0, %s12, %s10
  $region1: #{autoencoder_forward.1} parent=0
    #allocation2 [shape = 'u8[131072]{0}', space=vmem, size = 0x20000, scoped, tag = 'input window, operand 0, single buffered']
    #allocation3 [shape = 's32[1]{0}', space=sflag, size = 0x4, scoped, tag = 'scoped memory for autoencoder_forward.1']
    #allocation4 [shape = 's32[1]{0}', space=sflag, size = 0x4, scoped, tag = 'scoped memory for autoencoder_forward.1']
    #allocation5 [shape = 'u8[131072]{0}', space=vmem, size = 0x20000, scoped, tag = 'input window, operand 1, single buffered']
    #allocation6 [shape = 's32[1]{0}', space=sflag, size = 0x4, scoped, tag = 'scoped memory for autoencoder_forward.1']
    #allocation7 [shape = 'u8[2048]{0}', space=vmem, size = 0x800, scoped, tag = 'input window, operand 2, single buffered']
    #allocation8 [shape = 'u8[131072]{0}', space=vmem, size = 0x20000, scoped, tag = 'input window, operand 3, single buffered']
    #allocation9 [shape = 's32[1]{0}', space=sflag, size = 0x4, scoped, tag = 'scoped memory for autoencoder_forward.1']
    #allocation10 [shape = 'u8[131072]{0}', space=vmem, size = 0x20000, scoped, tag = 'input window, operand 5, single buffered']
    #allocation11 [shape = 'u8[131072]{0}', space=vmem, size = 0x20000, scoped, tag = 'input window, operand 7, single buffered']
    #allocation12 [shape = 's32[1]{0}', space=sflag, size = 0x4, scoped, tag = 'scoped memory for autoencoder_forward.1']
    #allocation13 [shape = 'u8[131072]{0}', space=vmem, size = 0x20000, scoped, tag = 'output window, operand 0, single buffered']
    %14 = vsyncpa [#allocation3], 0
    %15 = vsyncpa [#allocation6], 0
    %16 = vsyncpa [#allocation9], 0
    %17 = vsyncpa [#allocation12], 0
    %18 = vsyncpa [#allocation4], 0
    // Predicated region
    $region2: #{autoencoder_forward.1} parent=1 // pred_check
      _
    $region3: #{autoencoder_forward.1} parent=1 // pred_check_branch
      %20 = sbr.rel (0) target = $region5
    $region4: #{autoencoder_forward.1} parent=1 // pred_region
      %s22 = ssub.s32 4096, 4096
      %23 = vsyncadd [#allocation3], %s22
      %s24 = sshll.u32 [#allocation2], 4
      %s25 = int_to_ptr.vmem [resolvable:$true] %s24
      %30 = dma.hbm_to_vmem [thread:$0]  %s0, 4096, %s25, [#allocation3], 128, 128, 8
    $region5: #{autoencoder_forward.1} parent=1 // pred_fallthru
      _
    // Predicated region
    $region6: #{autoencoder_forward.1} parent=1 // pred_check
      _
    $region7: #{autoencoder_forward.1} parent=1 // pred_check_branch
      %32 = sbr.rel (0) target = $region9
    $region8: #{autoencoder_forward.1} parent=1 // pred_region
      %s34 = ssub.s32 4096, 4096
      %35 = vsyncadd [#allocation6], %s34
      %s36 = sshll.u32 [#allocation5], 4
      %s37 = int_to_ptr.vmem [resolvable:$true] %s36
      %42 = dma.hbm_to_vmem [thread:$0]  %s1, 4096, %s37, [#allocation6], 256, 256, 16
    $region9: #{autoencoder_forward.1} parent=1 // pred_fallthru
      _
    // Predicated region
    $region10: #{autoencoder_forward.1} parent=1 // pred_check
      _
    $region11: #{autoencoder_forward.1} parent=1 // pred_check_branch
      %44 = sbr.rel (0) target = $region13
    $region12: #{autoencoder_forward.1} parent=1 // pred_region
      %s46 = ssub.s32 64, 64
      %47 = vsyncadd [#allocation6], %s46
      %s49 = sshll.u32 [#allocation7], 4
      %s50 = int_to_ptr.vmem [resolvable:$true] %s49
      %52 = dma.hbm_to_vmem [thread:$0]  %s2, 64, %s50, [#allocation6]
    $region13: #{autoencoder_forward.1} parent=1 // pred_fallthru
      _
    // Predicated region
    $region14: #{autoencoder_forward.1} parent=1 // pred_check
      _
    $region15: #{autoencoder_forward.1} parent=1 // pred_check_branch
      %54 = sbr.rel (0) target = $region17
    $region16: #{autoencoder_forward.1} parent=1 // pred_region
      %s56 = ssub.s32 4096, 4096
      %57 = vsyncadd [#allocation9], %s56
      %s58 = sshll.u32 [#allocation8], 4
      %s59 = int_to_ptr.vmem [resolvable:$true] %s58
      %64 = dma.hbm_to_vmem [thread:$0]  %s3, 4096, %s59, [#allocation9], 64, 64, 4
    $region17: #{autoencoder_forward.1} parent=1 // pred_fallthru
      _
    // Predicated region
    $region18: #{autoencoder_forward.1} parent=1 // pred_check
      _
    $region19: #{autoencoder_forward.1} parent=1 // pred_check_branch
      %66 = sbr.rel (0) target = $region21
    $region20: #{autoencoder_forward.1} parent=1 // pred_region
      _
    $region21: #{autoencoder_forward.1} parent=1 // pred_fallthru
      _
    // Predicated region
    $region22: #{autoencoder_forward.1} parent=1 // pred_check
      _
    $region23: #{autoencoder_forward.1} parent=1 // pred_check_branch
      %68 = sbr.rel (0) target = $region25
    $region24: #{autoencoder_forward.1} parent=1 // pred_region
      %s70 = ssub.s32 4096, 4096
      %71 = vsyncadd [#allocation9], %s70
      %s72 = sshll.u32 [#allocation10], 4
      %s73 = int_to_ptr.vmem [resolvable:$true] %s72
      %78 = dma.hbm_to_vmem [thread:$0]  %s5, 4096, %s73, [#allocation9], 256, 256, 16
    $region25: #{autoencoder_forward.1} parent=1 // pred_fallthru
      _
    // Predicated region
    $region26: #{autoencoder_forward.1} parent=1 // pred_check
      _
    $region27: #{autoencoder_forward.1} parent=1 // pred_check_branch
      %80 = sbr.rel (0) target = $region29
    $region28: #{autoencoder_forward.1} parent=1 // pred_region
      _
    $region29: #{autoencoder_forward.1} parent=1 // pred_fallthru
      _
    // Predicated region
    $region30: #{autoencoder_forward.1} parent=1 // pred_check
      _
    $region31: #{autoencoder_forward.1} parent=1 // pred_check_branch
      %82 = sbr.rel (0) target = $region33
    $region32: #{autoencoder_forward.1} parent=1 // pred_region
      %s84 = ssub.s32 4096, 4096
      %85 = vsyncadd [#allocation12], %s84
      %s86 = sshll.u32 [#allocation11], 4
      %s87 = int_to_ptr.vmem [resolvable:$true] %s86
      %92 = dma.hbm_to_vmem [thread:$0]  %s7, 4096, %s87, [#allocation12], 64, 64, 4
    $region33: #{autoencoder_forward.1} parent=1 // pred_fallthru
      _
    // Predicated region
    $region34: #{autoencoder_forward.1} parent=1 // pred_check
      _
    $region35: #{autoencoder_forward.1} parent=1 // pred_check_branch
      %94 = sbr.rel (0) target = $region37
    $region36: #{autoencoder_forward.1} parent=1 // pred_region
      _
    $region37: #{autoencoder_forward.1} parent=1 // pred_fallthru
      _
    // Predicated region
    $region38: #{autoencoder_forward.1} parent=1 // pred_check
      _
    $region39: #{autoencoder_forward.1} parent=1 // pred_check_branch
      %96 = sbr.rel (0) target = $region41
    $region40: #{autoencoder_forward.1} parent=1 // pred_region
      %97 = dma.done [#allocation3], 4096
    $region41: #{autoencoder_forward.1} parent=1 // pred_fallthru
      _
    // Predicated region
    $region42: #{autoencoder_forward.1} parent=1 // pred_check
      _
    $region43: #{autoencoder_forward.1} parent=1 // pred_check_branch
      %99 = sbr.rel (0) target = $region45
    $region44: #{autoencoder_forward.1} parent=1 // pred_region
      %100 = dma.done [#allocation6], 4096
    $region45: #{autoencoder_forward.1} parent=1 // pred_fallthru
      _
    // Predicated region
    $region46: #{autoencoder_forward.1} parent=1 // pred_check
      _
    $region47: #{autoencoder_forward.1} parent=1 // pred_check_branch
      %102 = sbr.rel (0) target = $region49
    $region48: #{autoencoder_forward.1} parent=1 // pred_region
      %103 = dma.done [#allocation6], 64
    $region49: #{autoencoder_forward.1} parent=1 // pred_fallthru
      _
    // Predicated region
    $region50: #{autoencoder_forward.1} parent=1 // pred_check
      _
    $region51: #{autoencoder_forward.1} parent=1 // pred_check_branch
      %105 = sbr.rel (0) target = $region53
    $region52: #{autoencoder_forward.1} parent=1 // pred_region
      %106 = dma.done [#allocation9], 4096
    $region53: #{autoencoder_forward.1} parent=1 // pred_fallthru
      _
    // Predicated region
    $region54: #{autoencoder_forward.1} parent=1 // pred_check
      _
    $region55: #{autoencoder_forward.1} parent=1 // pred_check_branch
      %108 = sbr.rel (0) target = $region57
    $region56: #{autoencoder_forward.1} parent=1 // pred_region
      %109 = dma.done [#allocation9], 4096
    $region57: #{autoencoder_forward.1} parent=1 // pred_fallthru
      _
    // Predicated region
    $region58: #{autoencoder_forward.1} parent=1 // pred_check
      _
    $region59: #{autoencoder_forward.1} parent=1 // pred_check_branch
      %111 = sbr.rel (0) target = $region61
    $region60: #{autoencoder_forward.1} parent=1 // pred_region
      %112 = dma.done [#allocation12], 4096
    $region61: #{autoencoder_forward.1} parent=1 // pred_fallthru
      _
    %v114 = vld [vmem:[#allocation2] sm:$0xff]
    %v115 = vld [vmem:[#allocation2 + $0x8] sm:$0xff]
    %v116 = vld [vmem:[#allocation2 + $0x10] sm:$0xff]
    %v117 = vld [vmem:[#allocation2 + $0x18] sm:$0xff]
    %v118 = vld [vmem:[#allocation2 + $0x20] sm:$0xff]
    %v119 = vld [vmem:[#allocation2 + $0x28] sm:$0xff]
    %v120 = vld [vmem:[#allocation2 + $0x30] sm:$0xff]
    %v121 = vld [vmem:[#allocation2 + $0x38] sm:$0xff]
    %v122 = vld [vmem:[#allocation2 + $0x40] sm:$0xff]
    %v123 = vld [vmem:[#allocation2 + $0x48] sm:$0xff]
    %v124 = vld [vmem:[#allocation2 + $0x50] sm:$0xff]
    %v125 = vld [vmem:[#allocation2 + $0x58] sm:$0xff]
    %v126 = vld [vmem:[#allocation2 + $0x60] sm:$0xff]
    %v127 = vld [vmem:[#allocation2 + $0x68] sm:$0xff]
    %v128 = vld [vmem:[#allocation2 + $0x70] sm:$0xff]
    %v129 = vld [vmem:[#allocation2 + $0x78] sm:$0xff]
    %v130 = vld [vmem:[#allocation2 + $0x80] sm:$0xff]
    %v131 = vld [vmem:[#allocation2 + $0x88] sm:$0xff]
    %v132 = vld [vmem:[#allocation2 + $0x90] sm:$0xff]
    %v133 = vld [vmem:[#allocation2 + $0x98] sm:$0xff]
    %v134 = vld [vmem:[#allocation2 + $0xa0] sm:$0xff]
    %v135 = vld [vmem:[#allocation2 + $0xa8] sm:$0xff]
    %v136 = vld [vmem:[#allocation2 + $0xb0] sm:$0xff]
    %v137 = vld [vmem:[#allocation2 + $0xb8] sm:$0xff]
    %v138 = vld [vmem:[#allocation2 + $0xc0] sm:$0xff]
    %v139 = vld [vmem:[#allocation2 + $0xc8] sm:$0xff]
    %v140 = vld [vmem:[#allocation2 + $0xd0] sm:$0xff]
    %v141 = vld [vmem:[#allocation2 + $0xd8] sm:$0xff]
    %v142 = vld [vmem:[#allocation2 + $0xe0] sm:$0xff]
    %v143 = vld [vmem:[#allocation2 + $0xe8] sm:$0xff]
    %v144 = vld [vmem:[#allocation2 + $0xf0] sm:$0xff]
    %v145 = vld [vmem:[#allocation2 + $0xf8] sm:$0xff]
    %v146 = vpack.c.bf16 %v115, %v114
    %v147 = vpack.c.bf16 %v117, %v116
    %v148 = vpack.c.bf16 %v119, %v118
    %v149 = vpack.c.bf16 %v121, %v120
    %v150 = vpack.c.bf16 %v123, %v122
    %v151 = vpack.c.bf16 %v125, %v124
    %v152 = vpack.c.bf16 %v127, %v126
    %v153 = vpack.c.bf16 %v129, %v128
    %v154 = vpack.c.bf16 %v131, %v130
    %v155 = vpack.c.bf16 %v133, %v132
    %v156 = vpack.c.bf16 %v135, %v134
    %v157 = vpack.c.bf16 %v137, %v136
    %v158 = vpack.c.bf16 %v139, %v138
    %v159 = vpack.c.bf16 %v141, %v140
    %v160 = vpack.c.bf16 %v143, %v142
    %v161 = vpack.c.bf16 %v145, %v144
    %v162 = vld [vmem:[#allocation5] sm:$0xff]
    %v163 = vld [vmem:[#allocation5 + $0x8] sm:$0xff]
    %v164 = vld [vmem:[#allocation5 + $0x10] sm:$0xff]
    %v165 = vld [vmem:[#allocation5 + $0x18] sm:$0xff]
    %v166 = vld [vmem:[#allocation5 + $0x20] sm:$0xff]
    %v167 = vld [vmem:[#allocation5 + $0x28] sm:$0xff]
    %v168 = vld [vmem:[#allocation5 + $0x30] sm:$0xff]
    %v169 = vld [vmem:[#allocation5 + $0x38] sm:$0xff]
    %v170 = vld [vmem:[#allocation5 + $0x40] sm:$0xff]
    %v171 = vld [vmem:[#allocation5 + $0x48] sm:$0xff]
    %v172 = vld [vmem:[#allocation5 + $0x50] sm:$0xff]
    %v173 = vld [vmem:[#allocation5 + $0x58] sm:$0xff]
    %v174 = vld [vmem:[#allocation5 + $0x60] sm:$0xff]
    %v175 = vld [vmem:[#allocation5 + $0x68] sm:$0xff]
    %v176 = vld [vmem:[#allocation5 + $0x70] sm:$0xff]
    %v177 = vld [vmem:[#allocation5 + $0x78] sm:$0xff]
    %v178 = vld [vmem:[#allocation5 + $0x80] sm:$0xff]
    %v179 = vld [vmem:[#allocation5 + $0x88] sm:$0xff]
    %v180 = vld [vmem:[#allocation5 + $0x90] sm:$0xff]
    %v181 = vld [vmem:[#allocation5 + $0x98] sm:$0xff]
    %v182 = vld [vmem:[#allocation5 + $0xa0] sm:$0xff]
    %v183 = vld [vmem:[#allocation5 + $0xa8] sm:$0xff]
    %v184 = vld [vmem:[#allocation5 + $0xb0] sm:$0xff]
    %v185 = vld [vmem:[#allocation5 + $0xb8] sm:$0xff]
    %v186 = vld [vmem:[#allocation5 + $0xc0] sm:$0xff]
    %v187 = vld [vmem:[#allocation5 + $0xc8] sm:$0xff]
    %v188 = vld [vmem:[#allocation5 + $0xd0] sm:$0xff]
    %v189 = vld [vmem:[#allocation5 + $0xd8] sm:$0xff]
    %v190 = vld [vmem:[#allocation5 + $0xe0] sm:$0xff]
    %v191 = vld [vmem:[#allocation5 + $0xe8] sm:$0xff]
    %v192 = vld [vmem:[#allocation5 + $0xf0] sm:$0xff]
    %v193 = vld [vmem:[#allocation5 + $0xf8] sm:$0xff]
    %v194 = vld [vmem:[#allocation7] sm:$0xf]
    %v196 = vlaneseq
    %v197 = vshrl.u32 %v196, 7
    %v198 = vsub.s32 0, %v197
    %v199 = vrot.slane %v194, %v198
    %v200 = vlaneseq
    %v201 = vshrl.u32 %v200, 7
    %v202 = vsub.s32 1, %v201
    %v203 = vrot.slane %v194, %v202
    %v204 = vlaneseq
    %v205 = vshrl.u32 %v204, 7
    %v206 = vsub.s32 2, %v205
    %v207 = vrot.slane %v194, %v206
    %v208 = vlaneseq
    %v209 = vshrl.u32 %v208, 7
    %v210 = vsub.s32 3, %v209
    %v211 = vrot.slane %v194, %v210
    %v248 = vunpack.c.l.b16 %v162
    %v249 = vunpack.c.h.b16 %v162
    %v250 = vunpack.c.l.b16 %v163
    %v251 = vunpack.c.h.b16 %v163
    %v252 = vunpack.c.l.b16 %v164
    %v253 = vunpack.c.h.b16 %v164
    %v254 = vunpack.c.l.b16 %v165
    %v255 = vunpack.c.h.b16 %v165
    %v256 = vunpack.c.l.b16 %v166
    %v257 = vunpack.c.h.b16 %v166
    %v258 = vunpack.c.l.b16 %v167
    %v259 = vunpack.c.h.b16 %v167
    %v260 = vunpack.c.l.b16 %v168
    %v261 = vunpack.c.h.b16 %v168
    %v262 = vunpack.c.l.b16 %v169
    %v263 = vunpack.c.h.b16 %v169
    %v264 = vunpack.c.l.b16 %v170
    %v265 = vunpack.c.h.b16 %v170
    %v266 = vunpack.c.l.b16 %v171
    %v267 = vunpack.c.h.b16 %v171
    %v268 = vunpack.c.l.b16 %v172
    %v269 = vunpack.c.h.b16 %v172
    %v270 = vunpack.c.l.b16 %v173
    %v271 = vunpack.c.h.b16 %v173
    %v272 = vunpack.c.l.b16 %v174
    %v273 = vunpack.c.h.b16 %v174
    %v274 = vunpack.c.l.b16 %v175
    %v275 = vunpack.c.h.b16 %v175
    %v276 = vunpack.c.l.b16 %v176
    %v277 = vunpack.c.h.b16 %v176
    %v278 = vunpack.c.l.b16 %v177
    %v279 = vunpack.c.h.b16 %v177
    %v280 = vunpack.c.l.b16 %v178
    %v281 = vunpack.c.h.b16 %v178
    %v282 = vunpack.c.l.b16 %v179
    %v283 = vunpack.c.h.b16 %v179
    %v284 = vunpack.c.l.b16 %v180
    %v285 = vunpack.c.h.b16 %v180
    %v286 = vunpack.c.l.b16 %v181
    %v287 = vunpack.c.h.b16 %v181
    %v288 = vunpack.c.l.b16 %v182
    %v289 = vunpack.c.h.b16 %v182
    %v290 = vunpack.c.l.b16 %v183
    %v291 = vunpack.c.h.b16 %v183
    %v292 = vunpack.c.l.b16 %v184
    %v293 = vunpack.c.h.b16 %v184
    %v294 = vunpack.c.l.b16 %v185
    %v295 = vunpack.c.h.b16 %v185
    %v296 = vunpack.c.l.b16 %v186
    %v297 = vunpack.c.h.b16 %v186
    %v298 = vunpack.c.l.b16 %v187
    %v299 = vunpack.c.h.b16 %v187
    %v300 = vunpack.c.l.b16 %v188
    %v301 = vunpack.c.h.b16 %v188
    %v302 = vunpack.c.l.b16 %v189
    %v303 = vunpack.c.h.b16 %v189
    %v304 = vunpack.c.l.b16 %v190
    %v305 = vunpack.c.h.b16 %v190
    %v306 = vunpack.c.l.b16 %v191
    %v307 = vunpack.c.h.b16 %v191
    %v308 = vunpack.c.l.b16 %v192
    %v309 = vunpack.c.h.b16 %v192
    %v310 = vunpack.c.l.b16 %v193
    %v311 = vunpack.c.h.b16 %v193
    %v312 = vpack.c.b16 %v252, %v248
    %v313 = vpack.c.b16 %v253, %v249
    %v314 = vpack.c.b16 %v254, %v250
    %v315 = vpack.c.b16 %v255, %v251
    %v316 = vpack.c.b16 %v260, %v256
    %v317 = vpack.c.b16 %v261, %v257
    %v318 = vpack.c.b16 %v262, %v258
    %v319 = vpack.c.b16 %v263, %v259
    %v320 = vpack.c.b16 %v268, %v264
    %v321 = vpack.c.b16 %v269, %v265
    %v322 = vpack.c.b16 %v270, %v266
    %v323 = vpack.c.b16 %v271, %v267
    %v324 = vpack.c.b16 %v276, %v272
    %v325 = vpack.c.b16 %v277, %v273
    %v326 = vpack.c.b16 %v278, %v274
    %v327 = vpack.c.b16 %v279, %v275
    %v328 = vpack.c.b16 %v284, %v280
    %v329 = vpack.c.b16 %v285, %v281
    %v330 = vpack.c.b16 %v286, %v282
    %v331 = vpack.c.b16 %v287, %v283
    %v332 = vpack.c.b16 %v292, %v288
    %v333 = vpack.c.b16 %v293, %v289
    %v334 = vpack.c.b16 %v294, %v290
    %v335 = vpack.c.b16 %v295, %v291
    %v336 = vpack.c.b16 %v300, %v296
    %v337 = vpack.c.b16 %v301, %v297
    %v338 = vpack.c.b16 %v302, %v298
    %v339 = vpack.c.b16 %v303, %v299
    %v340 = vpack.c.b16 %v308, %v304
    %v341 = vpack.c.b16 %v309, %v305
    %v342 = vpack.c.b16 %v310, %v306
    %v343 = vpack.c.b16 %v311, %v307
    %376 = vmatprep.subr.bf16.mxu0 %v313
    %377 = vmatpush1.bf16.msra.mxu0 %v312
    %378 = vmatprep.subr.bf16.mxu0 %v317
    %379 = vmatpush1.bf16.msra.mxu0 %v316
    %380 = vmatprep.subr.bf16.mxu0 %v321
    %381 = vmatpush1.bf16.msra.mxu0 %v320
    %382 = vmatprep.subr.bf16.mxu0 %v325
    %383 = vmatpush1.bf16.msra.mxu0 %v324
    %384 = vmatprep.subr.bf16.mxu0 %v329
    %385 = vmatpush1.bf16.msra.mxu0 %v328
    %386 = vmatprep.subr.bf16.mxu0 %v333
    %387 = vmatpush1.bf16.msra.mxu0 %v332
    %388 = vmatprep.subr.bf16.mxu0 %v337
    %389 = vmatpush1.bf16.msra.mxu0 %v336
    %390 = vmatprep.subr.bf16.mxu0 %v341
    %391 = vmatpush1.bf16.msra.mxu0 %v340
    %392 = vmatprep.subr.bf16.mxu0 0
    %393 = vmatpush1.bf16.msra.mxu0 0
    %394 = vmatprep.subr.bf16.mxu0 0
    %395 = vmatpush1.bf16.msra.mxu0 0
    %396 = vmatprep.subr.bf16.mxu0 0
    %397 = vmatpush1.bf16.msra.mxu0 0
    %398 = vmatprep.subr.bf16.mxu0 0
    %399 = vmatpush1.bf16.msra.mxu0 0
    %400 = vmatprep.subr.bf16.mxu0 0
    %401 = vmatpush1.bf16.msra.mxu0 0
    %402 = vmatprep.subr.bf16.mxu0 0
    %403 = vmatpush1.bf16.msra.mxu0 0
    %404 = vmatprep.subr.bf16.mxu0 0
    %405 = vmatpush1.bf16.msra.mxu0 0
    %406 = vmatprep.subr.bf16.mxu0 0
    %407 = vmatpush1.bf16.msra.mxu0 0
    %408 = vmatprep.mubr.bf16.mxu0 0
    %409 = vmatmul.mubr.bf16.gmra.mrb[0].mxu0 %v146
    %v410 = vpop.f32.mrb[0].mxu0
    %v411 = vadd.f32 %v199, %v410
    %v412 = vpop.f32.mrb[0].mxu0
    %v413 = vadd.f32 %v203, %v412
    %v414 = vpop.f32.mrb[0].mxu0
    %v415 = vadd.f32 %v199, %v414
    %v416 = vpop.f32.mrb[0].mxu0
    %v417 = vadd.f32 %v203, %v416
    %418 = vmatprep.mubr.bf16.mxu0 0
    %419 = vmatmul.mubr.bf16.gmra.mrb[0].mxu0 %v147
    %v420 = vpop.f32.mrb[0].mxu0
    %v421 = vadd.f32 %v199, %v420
    %v422 = vpop.f32.mrb[0].mxu0
    %v423 = vadd.f32 %v203, %v422
    %v424 = vpop.f32.mrb[0].mxu0
    %v425 = vadd.f32 %v199, %v424
    %v426 = vpop.f32.mrb[0].mxu0
    %v427 = vadd.f32 %v203, %v426
    %428 = vmatprep.mubr.bf16.mxu0 0
    %429 = vmatmul.mubr.bf16.gmra.mrb[0].mxu0 %v148
    %v430 = vpop.f32.mrb[0].mxu0
    %v431 = vadd.f32 %v199, %v430
    %v432 = vpop.f32.mrb[0].mxu0
    %v433 = vadd.f32 %v203, %v432
    %v434 = vpop.f32.mrb[0].mxu0
    %v435 = vadd.f32 %v199, %v434
    %v436 = vpop.f32.mrb[0].mxu0
    %v437 = vadd.f32 %v203, %v436
    %438 = vmatprep.mubr.bf16.mxu0 0
    %439 = vmatmul.mubr.bf16.gmra.mrb[0].mxu0 %v149
    %v440 = vpop.f32.mrb[0].mxu0
    %v441 = vadd.f32 %v199, %v440
    %v442 = vpop.f32.mrb[0].mxu0
    %v443 = vadd.f32 %v203, %v442
    %v444 = vpop.f32.mrb[0].mxu0
    %v445 = vadd.f32 %v199, %v444
    %v446 = vpop.f32.mrb[0].mxu0
    %v447 = vadd.f32 %v203, %v446
    %448 = vmatprep.mubr.bf16.mxu0 0
    %449 = vmatmul.mubr.bf16.gmra.mrb[0].mxu0 %v150
    %v450 = vpop.f32.mrb[0].mxu0
    %v451 = vadd.f32 %v199, %v450
    %v452 = vpop.f32.mrb[0].mxu0
    %v453 = vadd.f32 %v203, %v452
    %v454 = vpop.f32.mrb[0].mxu0
    %v455 = vadd.f32 %v199, %v454
    %v456 = vpop.f32.mrb[0].mxu0
    %v457 = vadd.f32 %v203, %v456
    %458 = vmatprep.mubr.bf16.mxu0 0
    %459 = vmatmul.mubr.bf16.gmra.mrb[0].mxu0 %v151
    %v460 = vpop.f32.mrb[0].mxu0
    %v461 = vadd.f32 %v199, %v460
    %v462 = vpop.f32.mrb[0].mxu0
    %v463 = vadd.f32 %v203, %v462
    %v464 = vpop.f32.mrb[0].mxu0
    %v465 = vadd.f32 %v199, %v464
    %v466 = vpop.f32.mrb[0].mxu0
    %v467 = vadd.f32 %v203, %v466
    %468 = vmatprep.mubr.bf16.mxu0 0
    %469 = vmatmul.mubr.bf16.gmra.mrb[0].mxu0 %v152
    %v470 = vpop.f32.mrb[0].mxu0
    %v471 = vadd.f32 %v199, %v470
    %v472 = vpop.f32.mrb[0].mxu0
    %v473 = vadd.f32 %v203, %v472
    %v474 = vpop.f32.mrb[0].mxu0
    %v475 = vadd.f32 %v199, %v474
    %v476 = vpop.f32.mrb[0].mxu0
    %v477 = vadd.f32 %v203, %v476
    %478 = vmatprep.mubr.bf16.mxu0 0
    %479 = vmatmul.mubr.bf16.gmra.mrb[0].mxu0 %v153
    %v480 = vpop.f32.mrb[0].mxu0
    %v481 = vadd.f32 %v199, %v480
    %v482 = vpop.f32.mrb[0].mxu0
    %v483 = vadd.f32 %v203, %v482
    %v484 = vpop.f32.mrb[0].mxu0
    %v485 = vadd.f32 %v199, %v484
    %v486 = vpop.f32.mrb[0].mxu0
    %v487 = vadd.f32 %v203, %v486
    %488 = vmatprep.mubr.bf16.mxu0 0
    %489 = vmatmul.mubr.bf16.gmra.mrb[0].mxu0 %v154
    %v490 = vpop.f32.mrb[0].mxu0
    %v491 = vadd.f32 %v199, %v490
    %v492 = vpop.f32.mrb[0].mxu0
    %v493 = vadd.f32 %v203, %v492
    %v494 = vpop.f32.mrb[0].mxu0
    %v495 = vadd.f32 %v199, %v494
    %v496 = vpop.f32.mrb[0].mxu0
    %v497 = vadd.f32 %v203, %v496
    %498 = vmatprep.mubr.bf16.mxu0 0
    %499 = vmatmul.mubr.bf16.gmra.mrb[0].mxu0 %v155
    %v500 = vpop.f32.mrb[0].mxu0
    %v501 = vadd.f32 %v199, %v500
    %v502 = vpop.f32.mrb[0].mxu0
    %v503 = vadd.f32 %v203, %v502
    %v504 = vpop.f32.mrb[0].mxu0
    %v505 = vadd.f32 %v199, %v504
    %v506 = vpop.f32.mrb[0].mxu0
    %v507 = vadd.f32 %v203, %v506
    %508 = vmatprep.mubr.bf16.mxu0 0
    %509 = vmatmul.mubr.bf16.gmra.mrb[0].mxu0 %v156
    %v510 = vpop.f32.mrb[0].mxu0
    %v511 = vadd.f32 %v199, %v510
    %v512 = vpop.f32.mrb[0].mxu0
    %v513 = vadd.f32 %v203, %v512
    %v514 = vpop.f32.mrb[0].mxu0
    %v515 = vadd.f32 %v199, %v514
    %v516 = vpop.f32.mrb[0].mxu0
    %v517 = vadd.f32 %v203, %v516
    %518 = vmatprep.mubr.bf16.mxu0 0
    %519 = vmatmul.mubr.bf16.gmra.mrb[0].mxu0 %v157
    %v520 = vpop.f32.mrb[0].mxu0
    %v521 = vadd.f32 %v199, %v520
    %v522 = vpop.f32.mrb[0].mxu0
    %v523 = vadd.f32 %v203, %v522
    %v524 = vpop.f32.mrb[0].mxu0
    %v525 = vadd.f32 %v199, %v524
    %v526 = vpop.f32.mrb[0].mxu0
    %v527 = vadd.f32 %v203, %v526
    %528 = vmatprep.mubr.bf16.mxu0 0
    %529 = vmatmul.mubr.bf16.gmra.mrb[0].mxu0 %v158
    %v530 = vpop.f32.mrb[0].mxu0
    %v531 = vadd.f32 %v199, %v530
    %v532 = vpop.f32.mrb[0].mxu0
    %v533 = vadd.f32 %v203, %v532
    %v534 = vpop.f32.mrb[0].mxu0
    %v535 = vadd.f32 %v199, %v534
    %v536 = vpop.f32.mrb[0].mxu0
    %v537 = vadd.f32 %v203, %v536
    %538 = vmatprep.mubr.bf16.mxu0 0
    %539 = vmatmul.mubr.bf16.gmra.mrb[0].mxu0 %v159
    %v540 = vpop.f32.mrb[0].mxu0
    %v541 = vadd.f32 %v199, %v540
    %v542 = vpop.f32.mrb[0].mxu0
    %v543 = vadd.f32 %v203, %v542
    %v544 = vpop.f32.mrb[0].mxu0
    %v545 = vadd.f32 %v199, %v544
    %v546 = vpop.f32.mrb[0].mxu0
    %v547 = vadd.f32 %v203, %v546
    %548 = vmatprep.mubr.bf16.mxu0 0
    %549 = vmatmul.mubr.bf16.gmra.mrb[0].mxu0 %v160
    %v550 = vpop.f32.mrb[0].mxu0
    %v551 = vadd.f32 %v199, %v550
    %v552 = vpop.f32.mrb[0].mxu0
    %v553 = vadd.f32 %v203, %v552
    %v554 = vpop.f32.mrb[0].mxu0
    %v555 = vadd.f32 %v199, %v554
    %v556 = vpop.f32.mrb[0].mxu0
    %v557 = vadd.f32 %v203, %v556
    %558 = vmatprep.mubr.bf16.mxu0 0
    %559 = vmatmul.mubr.bf16.gmra.mrb[0].mxu0 %v161
    %v560 = vpop.f32.mrb[0].mxu0
    %v561 = vadd.f32 %v199, %v560
    %v562 = vpop.f32.mrb[0].mxu0
    %v563 = vadd.f32 %v203, %v562
    %v564 = vpop.f32.mrb[0].mxu0
    %v565 = vadd.f32 %v199, %v564
    %v566 = vpop.f32.mrb[0].mxu0
    %v567 = vadd.f32 %v203, %v566
    %568 = vdwg.mxu0
    %569 = vmatprep.subr.bf16.mxu0 %v315
    %570 = vmatpush1.bf16.msra.mxu0 %v314
    %571 = vmatprep.subr.bf16.mxu0 %v319
    %572 = vmatpush1.bf16.msra.mxu0 %v318
    %573 = vmatprep.subr.bf16.mxu0 %v323
    %574 = vmatpush1.bf16.msra.mxu0 %v322
    %575 = vmatprep.subr.bf16.mxu0 %v327
    %576 = vmatpush1.bf16.msra.mxu0 %v326
    %577 = vmatprep.subr.bf16.mxu0 %v331
    %578 = vmatpush1.bf16.msra.mxu0 %v330
    %579 = vmatprep.subr.bf16.mxu0 %v335
    %580 = vmatpush1.bf16.msra.mxu0 %v334
    %581 = vmatprep.subr.bf16.mxu0 %v339
    %582 = vmatpush1.bf16.msra.mxu0 %v338
    %583 = vmatprep.subr.bf16.mxu0 %v343
    %584 = vmatpush1.bf16.msra.mxu0 %v342
    %585 = vmatprep.subr.bf16.mxu0 0
    %586 = vmatpush1.bf16.msra.mxu0 0
    %587 = vmatprep.subr.bf16.mxu0 0
    %588 = vmatpush1.bf16.msra.mxu0 0
    %589 = vmatprep.subr.bf16.mxu0 0
    %590 = vmatpush1.bf16.msra.mxu0 0
    %591 = vmatprep.subr.bf16.mxu0 0
    %592 = vmatpush1.bf16.msra.mxu0 0
    %593 = vmatprep.subr.bf16.mxu0 0
    %594 = vmatpush1.bf16.msra.mxu0 0
    %595 = vmatprep.subr.bf16.mxu0 0
    %596 = vmatpush1.bf16.msra.mxu0 0
    %597 = vmatprep.subr.bf16.mxu0 0
    %598 = vmatpush1.bf16.msra.mxu0 0
    %599 = vmatprep.subr.bf16.mxu0 0
    %600 = vmatpush1.bf16.msra.mxu0 0
    %601 = vmatprep.mubr.bf16.mxu0 0
    %602 = vmatmul.mubr.bf16.gmra.mrb[0].mxu0 %v146
    %v603 = vpop.f32.mrb[0].mxu0
    %v604 = vadd.f32 %v207, %v603
    %v605 = vpop.f32.mrb[0].mxu0
    %v606 = vadd.f32 %v211, %v605
    %v607 = vpop.f32.mrb[0].mxu0
    %v608 = vadd.f32 %v207, %v607
    %v609 = vpop.f32.mrb[0].mxu0
    %v610 = vadd.f32 %v211, %v609
    %611 = vmatprep.mubr.bf16.mxu0 0
    %612 = vmatmul.mubr.bf16.gmra.mrb[0].mxu0 %v147
    %v613 = vpop.f32.mrb[0].mxu0
    %v614 = vadd.f32 %v207, %v613
    %v615 = vpop.f32.mrb[0].mxu0
    %v616 = vadd.f32 %v211, %v615
    %v617 = vpop.f32.mrb[0].mxu0
    %v618 = vadd.f32 %v207, %v617
    %v619 = vpop.f32.mrb[0].mxu0
    %v620 = vadd.f32 %v211, %v619
    %621 = vmatprep.mubr.bf16.mxu0 0
    %622 = vmatmul.mubr.bf16.gmra.mrb[0].mxu0 %v148
    %v623 = vpop.f32.mrb[0].mxu0
    %v624 = vadd.f32 %v207, %v623
    %v625 = vpop.f32.mrb[0].mxu0
    %v626 = vadd.f32 %v211, %v625
    %v627 = vpop.f32.mrb[0].mxu0
    %v628 = vadd.f32 %v207, %v627
    %v629 = vpop.f32.mrb[0].mxu0
    %v630 = vadd.f32 %v211, %v629
    %631 = vmatprep.mubr.bf16.mxu0 0
    %632 = vmatmul.mubr.bf16.gmra.mrb[0].mxu0 %v149
    %v633 = vpop.f32.mrb[0].mxu0
    %v634 = vadd.f32 %v207, %v633
    %v635 = vpop.f32.mrb[0].mxu0
    %v636 = vadd.f32 %v211, %v635
    %v637 = vpop.f32.mrb[0].mxu0
    %v638 = vadd.f32 %v207, %v637
    %v639 = vpop.f32.mrb[0].mxu0
    %v640 = vadd.f32 %v211, %v639
    %641 = vmatprep.mubr.bf16.mxu0 0
    %642 = vmatmul.mubr.bf16.gmra.mrb[0].mxu0 %v150
    %v643 = vpop.f32.mrb[0].mxu0
    %v644 = vadd.f32 %v207, %v643
    %v645 = vpop.f32.mrb[0].mxu0
    %v646 = vadd.f32 %v211, %v645
    %v647 = vpop.f32.mrb[0].mxu0
    %v648 = vadd.f32 %v207, %v647
    %v649 = vpop.f32.mrb[0].mxu0
    %v650 = vadd.f32 %v211, %v649
    %651 = vmatprep.mubr.bf16.mxu0 0
    %652 = vmatmul.mubr.bf16.gmra.mrb[0].mxu0 %v151
    %v653 = vpop.f32.mrb[0].mxu0
    %v654 = vadd.f32 %v207, %v653
    %v655 = vpop.f32.mrb[0].mxu0
    %v656 = vadd.f32 %v211, %v655
    %v657 = vpop.f32.mrb[0].mxu0
    %v658 = vadd.f32 %v207, %v657
    %v659 = vpop.f32.mrb[0].mxu0
    %v660 = vadd.f32 %v211, %v659
    %661 = vmatprep.mubr.bf16.mxu0 0
    %662 = vmatmul.mubr.bf16.gmra.mrb[0].mxu0 %v152
    %v663 = vpop.f32.mrb[0].mxu0
    %v664 = vadd.f32 %v207, %v663
    %v665 = vpop.f32.mrb[0].mxu0
    %v666 = vadd.f32 %v211, %v665
    %v667 = vpop.f32.mrb[0].mxu0
    %v668 = vadd.f32 %v207, %v667
    %v669 = vpop.f32.mrb[0].mxu0
    %v670 = vadd.f32 %v211, %v669
    %671 = vmatprep.mubr.bf16.mxu0 0
    %672 = vmatmul.mubr.bf16.gmra.mrb[0].mxu0 %v153
    %v673 = vpop.f32.mrb[0].mxu0
    %v674 = vadd.f32 %v207, %v673
    %v675 = vpop.f32.mrb[0].mxu0
    %v676 = vadd.f32 %v211, %v675
    %v677 = vpop.f32.mrb[0].mxu0
    %v678 = vadd.f32 %v207, %v677
    %v679 = vpop.f32.mrb[0].mxu0
    %v680 = vadd.f32 %v211, %v679
    %681 = vmatprep.mubr.bf16.mxu0 0
    %682 = vmatmul.mubr.bf16.gmra.mrb[0].mxu0 %v154
    %v683 = vpop.f32.mrb[0].mxu0
    %v684 = vadd.f32 %v207, %v683
    %v685 = vpop.f32.mrb[0].mxu0
    %v686 = vadd.f32 %v211, %v685
    %v687 = vpop.f32.mrb[0].mxu0
    %v688 = vadd.f32 %v207, %v687
    %v689 = vpop.f32.mrb[0].mxu0
    %v690 = vadd.f32 %v211, %v689
    %691 = vmatprep.mubr.bf16.mxu0 0
    %692 = vmatmul.mubr.bf16.gmra.mrb[0].mxu0 %v155
    %v693 = vpop.f32.mrb[0].mxu0
    %v694 = vadd.f32 %v207, %v693
    %v695 = vpop.f32.mrb[0].mxu0
    %v696 = vadd.f32 %v211, %v695
    %v697 = vpop.f32.mrb[0].mxu0
    %v698 = vadd.f32 %v207, %v697
    %v699 = vpop.f32.mrb[0].mxu0
    %v700 = vadd.f32 %v211, %v699
    %701 = vmatprep.mubr.bf16.mxu0 0
    %702 = vmatmul.mubr.bf16.gmra.mrb[0].mxu0 %v156
    %v703 = vpop.f32.mrb[0].mxu0
    %v704 = vadd.f32 %v207, %v703
    %v705 = vpop.f32.mrb[0].mxu0
    %v706 = vadd.f32 %v211, %v705
    %v707 = vpop.f32.mrb[0].mxu0
    %v708 = vadd.f32 %v207, %v707
    %v709 = vpop.f32.mrb[0].mxu0
    %v710 = vadd.f32 %v211, %v709
    %711 = vmatprep.mubr.bf16.mxu0 0
    %712 = vmatmul.mubr.bf16.gmra.mrb[0].mxu0 %v157
    %v713 = vpop.f32.mrb[0].mxu0
    %v714 = vadd.f32 %v207, %v713
    %v715 = vpop.f32.mrb[0].mxu0
    %v716 = vadd.f32 %v211, %v715
    %v717 = vpop.f32.mrb[0].mxu0
    %v718 = vadd.f32 %v207, %v717
    %v719 = vpop.f32.mrb[0].mxu0
    %v720 = vadd.f32 %v211, %v719
    %721 = vmatprep.mubr.bf16.mxu0 0
    %722 = vmatmul.mubr.bf16.gmra.mrb[0].mxu0 %v158
    %v723 = vpop.f32.mrb[0].mxu0
    %v724 = vadd.f32 %v207, %v723
    %v725 = vpop.f32.mrb[0].mxu0
    %v726 = vadd.f32 %v211, %v725
    %v727 = vpop.f32.mrb[0].mxu0
    %v728 = vadd.f32 %v207, %v727
    %v729 = vpop.f32.mrb[0].mxu0
    %v730 = vadd.f32 %v211, %v729
    %731 = vmatprep.mubr.bf16.mxu0 0
    %732 = vmatmul.mubr.bf16.gmra.mrb[0].mxu0 %v159
    %v733 = vpop.f32.mrb[0].mxu0
    %v734 = vadd.f32 %v207, %v733
    %v735 = vpop.f32.mrb[0].mxu0
    %v736 = vadd.f32 %v211, %v735
    %v737 = vpop.f32.mrb[0].mxu0
    %v738 = vadd.f32 %v207, %v737
    %v739 = vpop.f32.mrb[0].mxu0
    %v740 = vadd.f32 %v211, %v739
    %741 = vmatprep.mubr.bf16.mxu0 0
    %742 = vmatmul.mubr.bf16.gmra.mrb[0].mxu0 %v160
    %v743 = vpop.f32.mrb[0].mxu0
    %v744 = vadd.f32 %v207, %v743
    %v745 = vpop.f32.mrb[0].mxu0
    %v746 = vadd.f32 %v211, %v745
    %v747 = vpop.f32.mrb[0].mxu0
    %v748 = vadd.f32 %v207, %v747
    %v749 = vpop.f32.mrb[0].mxu0
    %v750 = vadd.f32 %v211, %v749
    %751 = vmatprep.mubr.bf16.mxu0 0
    %752 = vmatmul.mubr.bf16.gmra.mrb[0].mxu0 %v161
    %v753 = vpop.f32.mrb[0].mxu0
    %v754 = vadd.f32 %v207, %v753
    %v755 = vpop.f32.mrb[0].mxu0
    %v756 = vadd.f32 %v211, %v755
    %v757 = vpop.f32.mrb[0].mxu0
    %v758 = vadd.f32 %v207, %v757
    %v759 = vpop.f32.mrb[0].mxu0
    %v760 = vadd.f32 %v211, %v759
    %761 = vdwg.mxu0
    %v762 = vmax.f32 %v411, 0.0
    %v763 = vmax.f32 %v413, 0.0
    %v764 = vmax.f32 %v604, 0.0
    %v765 = vmax.f32 %v606, 0.0
    %v766 = vmax.f32 %v415, 0.0
    %v767 = vmax.f32 %v417, 0.0
    %v768 = vmax.f32 %v608, 0.0
    %v769 = vmax.f32 %v610, 0.0
    %v770 = vmax.f32 %v421, 0.0
    %v771 = vmax.f32 %v423, 0.0
    %v772 = vmax.f32 %v614, 0.0
    %v773 = vmax.f32 %v616, 0.0
    %v774 = vmax.f32 %v425, 0.0
    %v775 = vmax.f32 %v427, 0.0
    %v776 = vmax.f32 %v618, 0.0
    %v777 = vmax.f32 %v620, 0.0
    %v778 = vmax.f32 %v431, 0.0
    %v779 = vmax.f32 %v433, 0.0
    %v780 = vmax.f32 %v624, 0.0
    %v781 = vmax.f32 %v626, 0.0
    %v782 = vmax.f32 %v435, 0.0
    %v783 = vmax.f32 %v437, 0.0
    %v784 = vmax.f32 %v628, 0.0
    %v785 = vmax.f32 %v630, 0.0
    %v786 = vmax.f32 %v441, 0.0
    %v787 = vmax.f32 %v443, 0.0
    %v788 = vmax.f32 %v634, 0.0
    %v789 = vmax.f32 %v636, 0.0
    %v790 = vmax.f32 %v445, 0.0
    %v791 = vmax.f32 %v447, 0.0
    %v792 = vmax.f32 %v638, 0.0
    %v793 = vmax.f32 %v640, 0.0
    %v794 = vmax.f32 %v451, 0.0
    %v795 = vmax.f32 %v453, 0.0
    %v796 = vmax.f32 %v644, 0.0
    %v797 = vmax.f32 %v646, 0.0
    %v798 = vmax.f32 %v455, 0.0
    %v799 = vmax.f32 %v457, 0.0
    %v800 = vmax.f32 %v648, 0.0
    %v801 = vmax.f32 %v650, 0.0
    %v802 = vmax.f32 %v461, 0.0
    %v803 = vmax.f32 %v463, 0.0
    %v804 = vmax.f32 %v654, 0.0
    %v805 = vmax.f32 %v656, 0.0
    %v806 = vmax.f32 %v465, 0.0
    %v807 = vmax.f32 %v467, 0.0
    %v808 = vmax.f32 %v658, 0.0
    %v809 = vmax.f32 %v660, 0.0
    %v810 = vmax.f32 %v471, 0.0
    %v811 = vmax.f32 %v473, 0.0
    %v812 = vmax.f32 %v664, 0.0
    %v813 = vmax.f32 %v666, 0.0
    %v814 = vmax.f32 %v475, 0.0
    %v815 = vmax.f32 %v477, 0.0
    %v816 = vmax.f32 %v668, 0.0
    %v817 = vmax.f32 %v670, 0.0
    %v818 = vmax.f32 %v481, 0.0
    %v819 = vmax.f32 %v483, 0.0
    %v820 = vmax.f32 %v674, 0.0
    %v821 = vmax.f32 %v676, 0.0
    %v822 = vmax.f32 %v485, 0.0
    %v823 = vmax.f32 %v487, 0.0
    %v824 = vmax.f32 %v678, 0.0
    %v825 = vmax.f32 %v680, 0.0
    %v826 = vmax.f32 %v491, 0.0
    %v827 = vmax.f32 %v493, 0.0
    %v828 = vmax.f32 %v684, 0.0
    %v829 = vmax.f32 %v686, 0.0
    %v830 = vmax.f32 %v495, 0.0
    %v831 = vmax.f32 %v497, 0.0
    %v832 = vmax.f32 %v688, 0.0
    %v833 = vmax.f32 %v690, 0.0
    %v834 = vmax.f32 %v501, 0.0
    %v835 = vmax.f32 %v503, 0.0
    %v836 = vmax.f32 %v694, 0.0
    %v837 = vmax.f32 %v696, 0.0
    %v838 = vmax.f32 %v505, 0.0
    %v839 = vmax.f32 %v507, 0.0
    %v840 = vmax.f32 %v698, 0.0
    %v841 = vmax.f32 %v700, 0.0
    %v842 = vmax.f32 %v511, 0.0
    %v843 = vmax.f32 %v513, 0.0
    %v844 = vmax.f32 %v704, 0.0
    %v845 = vmax.f32 %v706, 0.0
    %v846 = vmax.f32 %v515, 0.0
    %v847 = vmax.f32 %v517, 0.0
    %v848 = vmax.f32 %v708, 0.0
    %v849 = vmax.f32 %v710, 0.0
    %v850 = vmax.f32 %v521, 0.0
    %v851 = vmax.f32 %v523, 0.0
    %v852 = vmax.f32 %v714, 0.0
    %v853 = vmax.f32 %v716, 0.0
    %v854 = vmax.f32 %v525, 0.0
    %v855 = vmax.f32 %v527, 0.0
    %v856 = vmax.f32 %v718, 0.0
    %v857 = vmax.f32 %v720, 0.0
    %v858 = vmax.f32 %v531, 0.0
    %v859 = vmax.f32 %v533, 0.0
    %v860 = vmax.f32 %v724, 0.0
    %v861 = vmax.f32 %v726, 0.0
    %v862 = vmax.f32 %v535, 0.0
    %v863 = vmax.f32 %v537, 0.0
    %v864 = vmax.f32 %v728, 0.0
    %v865 = vmax.f32 %v730, 0.0
    %v866 = vmax.f32 %v541, 0.0
    %v867 = vmax.f32 %v543, 0.0
    %v868 = vmax.f32 %v734, 0.0
    %v869 = vmax.f32 %v736, 0.0
    %v870 = vmax.f32 %v545, 0.0
    %v871 = vmax.f32 %v547, 0.0
    %v872 = vmax.f32 %v738, 0.0
    %v873 = vmax.f32 %v740, 0.0
    %v874 = vmax.f32 %v551, 0.0
    %v875 = vmax.f32 %v553, 0.0
    %v876 = vmax.f32 %v744, 0.0
    %v877 = vmax.f32 %v746, 0.0
    %v878 = vmax.f32 %v555, 0.0
    %v879 = vmax.f32 %v557, 0.0
    %v880 = vmax.f32 %v748, 0.0
    %v881 = vmax.f32 %v750, 0.0
    %v882 = vmax.f32 %v561, 0.0
    %v883 = vmax.f32 %v563, 0.0
    %v884 = vmax.f32 %v754, 0.0
    %v885 = vmax.f32 %v756, 0.0
    %v886 = vmax.f32 %v565, 0.0
    %v887 = vmax.f32 %v567, 0.0
    %v888 = vmax.f32 %v758, 0.0
    %v889 = vmax.f32 %v760, 0.0
    %v890 = vpack.c.bf16 %v766, %v762
    %v891 = vpack.c.bf16 %v767, %v763
    %v892 = vpack.c.bf16 %v768, %v764
    %v893 = vpack.c.bf16 %v769, %v765
    %v894 = vpack.c.bf16 %v774, %v770
    %v895 = vpack.c.bf16 %v775, %v771
    %v896 = vpack.c.bf16 %v776, %v772
    %v897 = vpack.c.bf16 %v777, %v773
    %v898 = vpack.c.bf16 %v782, %v778
    %v899 = vpack.c.bf16 %v783, %v779
    %v900 = vpack.c.bf16 %v784, %v780
    %v901 = vpack.c.bf16 %v785, %v781
    %v902 = vpack.c.bf16 %v790, %v786
    %v903 = vpack.c.bf16 %v791, %v787
    %v904 = vpack.c.bf16 %v792, %v788
    %v905 = vpack.c.bf16 %v793, %v789
    %v906 = vpack.c.bf16 %v798, %v794
    %v907 = vpack.c.bf16 %v799, %v795
    %v908 = vpack.c.bf16 %v800, %v796
    %v909 = vpack.c.bf16 %v801, %v797
    %v910 = vpack.c.bf16 %v806, %v802
    %v911 = vpack.c.bf16 %v807, %v803
    %v912 = vpack.c.bf16 %v808, %v804
    %v913 = vpack.c.bf16 %v809, %v805
    %v914 = vpack.c.bf16 %v814, %v810
    %v915 = vpack.c.bf16 %v815, %v811
    %v916 = vpack.c.bf16 %v816, %v812
    %v917 = vpack.c.bf16 %v817, %v813
    %v918 = vpack.c.bf16 %v822, %v818
    %v919 = vpack.c.bf16 %v823, %v819
    %v920 = vpack.c.bf16 %v824, %v820
    %v921 = vpack.c.bf16 %v825, %v821
    %v922 = vpack.c.bf16 %v830, %v826
    %v923 = vpack.c.bf16 %v831, %v827
    %v924 = vpack.c.bf16 %v832, %v828
    %v925 = vpack.c.bf16 %v833, %v829
    %v926 = vpack.c.bf16 %v838, %v834
    %v927 = vpack.c.bf16 %v839, %v835
    %v928 = vpack.c.bf16 %v840, %v836
    %v929 = vpack.c.bf16 %v841, %v837
    %v930 = vpack.c.bf16 %v846, %v842
    %v931 = vpack.c.bf16 %v847, %v843
    %v932 = vpack.c.bf16 %v848, %v844
    %v933 = vpack.c.bf16 %v849, %v845
    %v934 = vpack.c.bf16 %v854, %v850
    %v935 = vpack.c.bf16 %v855, %v851
    %v936 = vpack.c.bf16 %v856, %v852
    %v937 = vpack.c.bf16 %v857, %v853
    %v938 = vpack.c.bf16 %v862, %v858
    %v939 = vpack.c.bf16 %v863, %v859
    %v940 = vpack.c.bf16 %v864, %v860
    %v941 = vpack.c.bf16 %v865, %v861
    %v942 = vpack.c.bf16 %v870, %v866
    %v943 = vpack.c.bf16 %v871, %v867
    %v944 = vpack.c.bf16 %v872, %v868
    %v945 = vpack.c.bf16 %v873, %v869
    %v946 = vpack.c.bf16 %v878, %v874
    %v947 = vpack.c.bf16 %v879, %v875
    %v948 = vpack.c.bf16 %v880, %v876
    %v949 = vpack.c.bf16 %v881, %v877
    %v950 = vpack.c.bf16 %v886, %v882
    %v951 = vpack.c.bf16 %v887, %v883
    %v952 = vpack.c.bf16 %v888, %v884
    %v953 = vpack.c.bf16 %v889, %v885
    %v954 = vld [vmem:[#allocation8] sm:$0xf]
    %v955 = vld [vmem:[#allocation8 + $0x4] sm:$0xf]
    %v956 = vld [vmem:[#allocation8 + $0x8] sm:$0xf]
    %v957 = vld [vmem:[#allocation8 + $0xc] sm:$0xf]
    %v958 = vld [vmem:[#allocation8 + $0x10] sm:$0xf]
    %v959 = vld [vmem:[#allocation8 + $0x14] sm:$0xf]
    %v960 = vld [vmem:[#allocation8 + $0x18] sm:$0xf]
    %v961 = vld [vmem:[#allocation8 + $0x1c] sm:$0xf]
    %v962 = vld [vmem:[#allocation8 + $0x20] sm:$0xf]
    %v963 = vld [vmem:[#allocation8 + $0x24] sm:$0xf]
    %v964 = vld [vmem:[#allocation8 + $0x28] sm:$0xf]
    %v965 = vld [vmem:[#allocation8 + $0x2c] sm:$0xf]
    %v966 = vld [vmem:[#allocation8 + $0x30] sm:$0xf]
    %v967 = vld [vmem:[#allocation8 + $0x34] sm:$0xf]
    %v968 = vld [vmem:[#allocation8 + $0x38] sm:$0xf]
    %v969 = vld [vmem:[#allocation8 + $0x3c] sm:$0xf]
    %v970 = vld [vmem:[#allocation8 + $0x40] sm:$0xf]
    %v971 = vld [vmem:[#allocation8 + $0x44] sm:$0xf]
    %v972 = vld [vmem:[#allocation8 + $0x48] sm:$0xf]
    %v973 = vld [vmem:[#allocation8 + $0x4c] sm:$0xf]
    %v974 = vld [vmem:[#allocation8 + $0x50] sm:$0xf]
    %v975 = vld [vmem:[#allocation8 + $0x54] sm:$0xf]
    %v976 = vld [vmem:[#allocation8 + $0x58] sm:$0xf]
    %v977 = vld [vmem:[#allocation8 + $0x5c] sm:$0xf]
    %v978 = vld [vmem:[#allocation8 + $0x60] sm:$0xf]
    %v979 = vld [vmem:[#allocation8 + $0x64] sm:$0xf]
    %v980 = vld [vmem:[#allocation8 + $0x68] sm:$0xf]
    %v981 = vld [vmem:[#allocation8 + $0x6c] sm:$0xf]
    %v982 = vld [vmem:[#allocation8 + $0x70] sm:$0xf]
    %v983 = vld [vmem:[#allocation8 + $0x74] sm:$0xf]
    %v984 = vld [vmem:[#allocation8 + $0x78] sm:$0xf]
    %v985 = vld [vmem:[#allocation8 + $0x7c] sm:$0xf]
    %v986 = vld [vmem:[#allocation8 + $0x80] sm:$0xf]
    %v987 = vld [vmem:[#allocation8 + $0x84] sm:$0xf]
    %v988 = vld [vmem:[#allocation8 + $0x88] sm:$0xf]
    %v989 = vld [vmem:[#allocation8 + $0x8c] sm:$0xf]
    %v990 = vld [vmem:[#allocation8 + $0x90] sm:$0xf]
    %v991 = vld [vmem:[#allocation8 + $0x94] sm:$0xf]
    %v992 = vld [vmem:[#allocation8 + $0x98] sm:$0xf]
    %v993 = vld [vmem:[#allocation8 + $0x9c] sm:$0xf]
    %v994 = vld [vmem:[#allocation8 + $0xa0] sm:$0xf]
    %v995 = vld [vmem:[#allocation8 + $0xa4] sm:$0xf]
    %v996 = vld [vmem:[#allocation8 + $0xa8] sm:$0xf]
    %v997 = vld [vmem:[#allocation8 + $0xac] sm:$0xf]
    %v998 = vld [vmem:[#allocation8 + $0xb0] sm:$0xf]
    %v999 = vld [vmem:[#allocation8 + $0xb4] sm:$0xf]
    %v1000 = vld [vmem:[#allocation8 + $0xb8] sm:$0xf]
    %v1001 = vld [vmem:[#allocation8 + $0xbc] sm:$0xf]
    %v1002 = vld [vmem:[#allocation8 + $0xc0] sm:$0xf]
    %v1003 = vld [vmem:[#allocation8 + $0xc4] sm:$0xf]
    %v1004 = vld [vmem:[#allocation8 + $0xc8] sm:$0xf]
    %v1005 = vld [vmem:[#allocation8 + $0xcc] sm:$0xf]
    %v1006 = vld [vmem:[#allocation8 + $0xd0] sm:$0xf]
    %v1007 = vld [vmem:[#allocation8 + $0xd4] sm:$0xf]
    %v1008 = vld [vmem:[#allocation8 + $0xd8] sm:$0xf]
    %v1009 = vld [vmem:[#allocation8 + $0xdc] sm:$0xf]
    %v1010 = vld [vmem:[#allocation8 + $0xe0] sm:$0xf]
    %v1011 = vld [vmem:[#allocation8 + $0xe4] sm:$0xf]
    %v1012 = vld [vmem:[#allocation8 + $0xe8] sm:$0xf]
    %v1013 = vld [vmem:[#allocation8 + $0xec] sm:$0xf]
    %v1014 = vld [vmem:[#allocation8 + $0xf0] sm:$0xf]
    %v1015 = vld [vmem:[#allocation8 + $0xf4] sm:$0xf]
    %v1016 = vld [vmem:[#allocation8 + $0xf8] sm:$0xf]
    %v1017 = vld [vmem:[#allocation8 + $0xfc] sm:$0xf]
    %v1018 = vld [vmem:[%s4] sm:$0x1]
    %v1020 = vlaneseq
    %v1021 = vshrl.u32 %v1020, 7
    %v1022 = vsub.s32 0, %v1021
    %v1023 = vrot.slane %v1018, %v1022
    %v1089 = vunpack.c.l.b16 %v954
    %v1090 = vunpack.c.l.b16 %v955
    %v1091 = vunpack.c.l.b16 %v956
    %v1092 = vunpack.c.l.b16 %v957
    %v1093 = vunpack.c.l.b16 %v958
    %v1094 = vunpack.c.l.b16 %v959
    %v1095 = vunpack.c.l.b16 %v960
    %v1096 = vunpack.c.l.b16 %v961
    %v1097 = vunpack.c.l.b16 %v962
    %v1098 = vunpack.c.l.b16 %v963
    %v1099 = vunpack.c.l.b16 %v964
    %v1100 = vunpack.c.l.b16 %v965
    %v1101 = vunpack.c.l.b16 %v966
    %v1102 = vunpack.c.l.b16 %v967
    %v1103 = vunpack.c.l.b16 %v968
    %v1104 = vunpack.c.l.b16 %v969
    %v1105 = vunpack.c.l.b16 %v970
    %v1106 = vunpack.c.l.b16 %v971
    %v1107 = vunpack.c.l.b16 %v972
    %v1108 = vunpack.c.l.b16 %v973
    %v1109 = vunpack.c.l.b16 %v974
    %v1110 = vunpack.c.l.b16 %v975
    %v1111 = vunpack.c.l.b16 %v976
    %v1112 = vunpack.c.l.b16 %v977
    %v1113 = vunpack.c.l.b16 %v978
    %v1114 = vunpack.c.l.b16 %v979
    %v1115 = vunpack.c.l.b16 %v980
    %v1116 = vunpack.c.l.b16 %v981
    %v1117 = vunpack.c.l.b16 %v982
    %v1118 = vunpack.c.l.b16 %v983
    %v1119 = vunpack.c.l.b16 %v984
    %v1120 = vunpack.c.l.b16 %v985
    %v1121 = vunpack.c.l.b16 %v986
    %v1122 = vunpack.c.l.b16 %v987
    %v1123 = vunpack.c.l.b16 %v988
    %v1124 = vunpack.c.l.b16 %v989
    %v1125 = vunpack.c.l.b16 %v990
    %v1126 = vunpack.c.l.b16 %v991
    %v1127 = vunpack.c.l.b16 %v992
    %v1128 = vunpack.c.l.b16 %v993
    %v1129 = vunpack.c.l.b16 %v994
    %v1130 = vunpack.c.l.b16 %v995
    %v1131 = vunpack.c.l.b16 %v996
    %v1132 = vunpack.c.l.b16 %v997
    %v1133 = vunpack.c.l.b16 %v998
    %v1134 = vunpack.c.l.b16 %v999
    %v1135 = vunpack.c.l.b16 %v1000
    %v1136 = vunpack.c.l.b16 %v1001
    %v1137 = vunpack.c.l.b16 %v1002
    %v1138 = vunpack.c.l.b16 %v1003
    %v1139 = vunpack.c.l.b16 %v1004
    %v1140 = vunpack.c.l.b16 %v1005
    %v1141 = vunpack.c.l.b16 %v1006
    %v1142 = vunpack.c.l.b16 %v1007
    %v1143 = vunpack.c.l.b16 %v1008
    %v1144 = vunpack.c.l.b16 %v1009
    %v1145 = vunpack.c.l.b16 %v1010
    %v1146 = vunpack.c.l.b16 %v1011
    %v1147 = vunpack.c.l.b16 %v1012
    %v1148 = vunpack.c.l.b16 %v1013
    %v1149 = vunpack.c.l.b16 %v1014
    %v1150 = vunpack.c.l.b16 %v1015
    %v1151 = vunpack.c.l.b16 %v1016
    %v1152 = vunpack.c.l.b16 %v1017
    %v1153 = vpack.c.b16 %v1090, %v1089
    %v1154 = vpack.c.b16 %v1092, %v1091
    %v1155 = vpack.c.b16 %v1094, %v1093
    %v1156 = vpack.c.b16 %v1096, %v1095
    %v1157 = vpack.c.b16 %v1098, %v1097
    %v1158 = vpack.c.b16 %v1100, %v1099
    %v1159 = vpack.c.b16 %v1102, %v1101
    %v1160 = vpack.c.b16 %v1104, %v1103
    %v1161 = vpack.c.b16 %v1106, %v1105
    %v1162 = vpack.c.b16 %v1108, %v1107
    %v1163 = vpack.c.b16 %v1110, %v1109
    %v1164 = vpack.c.b16 %v1112, %v1111
    %v1165 = vpack.c.b16 %v1114, %v1113
    %v1166 = vpack.c.b16 %v1116, %v1115
    %v1167 = vpack.c.b16 %v1118, %v1117
    %v1168 = vpack.c.b16 %v1120, %v1119
    %v1169 = vpack.c.b16 %v1122, %v1121
    %v1170 = vpack.c.b16 %v1124, %v1123
    %v1171 = vpack.c.b16 %v1126, %v1125
    %v1172 = vpack.c.b16 %v1128, %v1127
    %v1173 = vpack.c.b16 %v1130, %v1129
    %v1174 = vpack.c.b16 %v1132, %v1131
    %v1175 = vpack.c.b16 %v1134, %v1133
    %v1176 = vpack.c.b16 %v1136, %v1135
    %v1177 = vpack.c.b16 %v1138, %v1137
    %v1178 = vpack.c.b16 %v1140, %v1139
    %v1179 = vpack.c.b16 %v1142, %v1141
    %v1180 = vpack.c.b16 %v1144, %v1143
    %v1181 = vpack.c.b16 %v1146, %v1145
    %v1182 = vpack.c.b16 %v1148, %v1147
    %v1183 = vpack.c.b16 %v1150, %v1149
    %v1184 = vpack.c.b16 %v1152, %v1151
    %1217 = vmatprep.subr.bf16.mxu0 0
    %1218 = vmatpush1.bf16.msra.mxu0 %v1153
    %1219 = vmatprep.subr.bf16.mxu0 0
    %1220 = vmatpush1.bf16.msra.mxu0 %v1154
    %1221 = vmatprep.subr.bf16.mxu0 0
    %1222 = vmatpush1.bf16.msra.mxu0 %v1155
    %1223 = vmatprep.subr.bf16.mxu0 0
    %1224 = vmatpush1.bf16.msra.mxu0 %v1156
    %1225 = vmatprep.subr.bf16.mxu0 0
    %1226 = vmatpush1.bf16.msra.mxu0 %v1157
    %1227 = vmatprep.subr.bf16.mxu0 0
    %1228 = vmatpush1.bf16.msra.mxu0 %v1158
    %1229 = vmatprep.subr.bf16.mxu0 0
    %1230 = vmatpush1.bf16.msra.mxu0 %v1159
    %1231 = vmatprep.subr.bf16.mxu0 0
    %1232 = vmatpush1.bf16.msra.mxu0 %v1160
    %1233 = vmatprep.subr.bf16.mxu0 0
    %1234 = vmatpush1.bf16.msra.mxu0 %v1161
    %1235 = vmatprep.subr.bf16.mxu0 0
    %1236 = vmatpush1.bf16.msra.mxu0 %v1162
    %1237 = vmatprep.subr.bf16.mxu0 0
    %1238 = vmatpush1.bf16.msra.mxu0 %v1163
    %1239 = vmatprep.subr.bf16.mxu0 0
    %1240 = vmatpush1.bf16.msra.mxu0 %v1164
    %1241 = vmatprep.subr.bf16.mxu0 0
    %1242 = vmatpush1.bf16.msra.mxu0 %v1165
    %1243 = vmatprep.subr.bf16.mxu0 0
    %1244 = vmatpush1.bf16.msra.mxu0 %v1166
    %1245 = vmatprep.subr.bf16.mxu0 0
    %1246 = vmatpush1.bf16.msra.mxu0 %v1167
    %1247 = vmatprep.subr.bf16.mxu0 0
    %1248 = vmatpush1.bf16.msra.mxu0 %v1168
    %1249 = vmatprep.mubr.bf16.mxu0 %v891
    %1250 = vmatmul.mubr.bf16.gmra.mrb[0].mxu0 %v890
    %v1251 = vpop.f32.mrb[0].mxu0
    %v1252 = vadd.f32 %v1023, %v1251
    %v1253 = vpop.f32.mrb[0].mxu0
    %v1254 = vpop.f32.mrb[0].mxu0
    %v1255 = vadd.f32 %v1023, %v1254
    %v1256 = vpop.f32.mrb[0].mxu0
    %1257 = vmatprep.mubr.bf16.mxu0 %v895
    %1258 = vmatmul.mubr.bf16.gmra.mrb[0].mxu0 %v894
    %v1259 = vpop.f32.mrb[0].mxu0
    %v1260 = vadd.f32 %v1023, %v1259
    %v1261 = vpop.f32.mrb[0].mxu0
    %v1262 = vpop.f32.mrb[0].mxu0
    %v1263 = vadd.f32 %v1023, %v1262
    %v1264 = vpop.f32.mrb[0].mxu0
    %1265 = vmatprep.mubr.bf16.mxu0 %v899
    %1266 = vmatmul.mubr.bf16.gmra.mrb[0].mxu0 %v898
    %v1267 = vpop.f32.mrb[0].mxu0
    %v1268 = vadd.f32 %v1023, %v1267
    %v1269 = vpop.f32.mrb[0].mxu0
    %v1270 = vpop.f32.mrb[0].mxu0
    %v1271 = vadd.f32 %v1023, %v1270
    %v1272 = vpop.f32.mrb[0].mxu0
    %1273 = vmatprep.mubr.bf16.mxu0 %v903
    %1274 = vmatmul.mubr.bf16.gmra.mrb[0].mxu0 %v902
    %v1275 = vpop.f32.mrb[0].mxu0
    %v1276 = vadd.f32 %v1023, %v1275
    %v1277 = vpop.f32.mrb[0].mxu0
    %v1278 = vpop.f32.mrb[0].mxu0
    %v1279 = vadd.f32 %v1023, %v1278
    %v1280 = vpop.f32.mrb[0].mxu0
    %1281 = vmatprep.mubr.bf16.mxu0 %v907
    %1282 = vmatmul.mubr.bf16.gmra.mrb[0].mxu0 %v906
    %v1283 = vpop.f32.mrb[0].mxu0
    %v1284 = vadd.f32 %v1023, %v1283
    %v1285 = vpop.f32.mrb[0].mxu0
    %v1286 = vpop.f32.mrb[0].mxu0
    %v1287 = vadd.f32 %v1023, %v1286
    %v1288 = vpop.f32.mrb[0].mxu0
    %1289 = vmatprep.mubr.bf16.mxu0 %v911
    %1290 = vmatmul.mubr.bf16.gmra.mrb[0].mxu0 %v910
    %v1291 = vpop.f32.mrb[0].mxu0
    %v1292 = vadd.f32 %v1023, %v1291
    %v1293 = vpop.f32.mrb[0].mxu0
    %v1294 = vpop.f32.mrb[0].mxu0
    %v1295 = vadd.f32 %v1023, %v1294
    %v1296 = vpop.f32.mrb[0].mxu0
    %1297 = vmatprep.mubr.bf16.mxu0 %v915
    %1298 = vmatmul.mubr.bf16.gmra.mrb[0].mxu0 %v914
    %v1299 = vpop.f32.mrb[0].mxu0
    %v1300 = vadd.f32 %v1023, %v1299
    %v1301 = vpop.f32.mrb[0].mxu0
    %v1302 = vpop.f32.mrb[0].mxu0
    %v1303 = vadd.f32 %v1023, %v1302
    %v1304 = vpop.f32.mrb[0].mxu0
    %1305 = vmatprep.mubr.bf16.mxu0 %v919
    %1306 = vmatmul.mubr.bf16.gmra.mrb[0].mxu0 %v918
    %v1307 = vpop.f32.mrb[0].mxu0
    %v1308 = vadd.f32 %v1023, %v1307
    %v1309 = vpop.f32.mrb[0].mxu0
    %v1310 = vpop.f32.mrb[0].mxu0
    %v1311 = vadd.f32 %v1023, %v1310
    %v1312 = vpop.f32.mrb[0].mxu0
    %1313 = vmatprep.mubr.bf16.mxu0 %v923
    %1314 = vmatmul.mubr.bf16.gmra.mrb[0].mxu0 %v922
    %v1315 = vpop.f32.mrb[0].mxu0
    %v1316 = vadd.f32 %v1023, %v1315
    %v1317 = vpop.f32.mrb[0].mxu0
    %v1318 = vpop.f32.mrb[0].mxu0
    %v1319 = vadd.f32 %v1023, %v1318
    %v1320 = vpop.f32.mrb[0].mxu0
    %1321 = vmatprep.mubr.bf16.mxu0 %v927
    %1322 = vmatmul.mubr.bf16.gmra.mrb[0].mxu0 %v926
    %v1323 = vpop.f32.mrb[0].mxu0
    %v1324 = vadd.f32 %v1023, %v1323
    %v1325 = vpop.f32.mrb[0].mxu0
    %v1326 = vpop.f32.mrb[0].mxu0
    %v1327 = vadd.f32 %v1023, %v1326
    %v1328 = vpop.f32.mrb[0].mxu0
    %1329 = vmatprep.mubr.bf16.mxu0 %v931
    %1330 = vmatmul.mubr.bf16.gmra.mrb[0].mxu0 %v930
    %v1331 = vpop.f32.mrb[0].mxu0
    %v1332 = vadd.f32 %v1023, %v1331
    %v1333 = vpop.f32.mrb[0].mxu0
    %v1334 = vpop.f32.mrb[0].mxu0
    %v1335 = vadd.f32 %v1023, %v1334
    %v1336 = vpop.f32.mrb[0].mxu0
    %1337 = vmatprep.mubr.bf16.mxu0 %v935
    %1338 = vmatmul.mubr.bf16.gmra.mrb[0].mxu0 %v934
    %v1339 = vpop.f32.mrb[0].mxu0
    %v1340 = vadd.f32 %v1023, %v1339
    %v1341 = vpop.f32.mrb[0].mxu0
    %v1342 = vpop.f32.mrb[0].mxu0
    %v1343 = vadd.f32 %v1023, %v1342
    %v1344 = vpop.f32.mrb[0].mxu0
    %1345 = vmatprep.mubr.bf16.mxu0 %v939
    %1346 = vmatmul.mubr.bf16.gmra.mrb[0].mxu0 %v938
    %v1347 = vpop.f32.mrb[0].mxu0
    %v1348 = vadd.f32 %v1023, %v1347
    %v1349 = vpop.f32.mrb[0].mxu0
    %v1350 = vpop.f32.mrb[0].mxu0
    %v1351 = vadd.f32 %v1023, %v1350
    %v1352 = vpop.f32.mrb[0].mxu0
    %1353 = vmatprep.mubr.bf16.mxu0 %v943
    %1354 = vmatmul.mubr.bf16.gmra.mrb[0].mxu0 %v942
    %v1355 = vpop.f32.mrb[0].mxu0
    %v1356 = vadd.f32 %v1023, %v1355
    %v1357 = vpop.f32.mrb[0].mxu0
    %v1358 = vpop.f32.mrb[0].mxu0
    %v1359 = vadd.f32 %v1023, %v1358
    %v1360 = vpop.f32.mrb[0].mxu0
    %1361 = vmatprep.mubr.bf16.mxu0 %v947
    %1362 = vmatmul.mubr.bf16.gmra.mrb[0].mxu0 %v946
    %v1363 = vpop.f32.mrb[0].mxu0
    %v1364 = vadd.f32 %v1023, %v1363
    %v1365 = vpop.f32.mrb[0].mxu0
    %v1366 = vpop.f32.mrb[0].mxu0
    %v1367 = vadd.f32 %v1023, %v1366
    %v1368 = vpop.f32.mrb[0].mxu0
    %1369 = vmatprep.mubr.bf16.mxu0 %v951
    %1370 = vmatmul.mubr.bf16.gmra.mrb[0].mxu0 %v950
    %v1371 = vpop.f32.mrb[0].mxu0
    %v1372 = vadd.f32 %v1023, %v1371
    %v1373 = vpop.f32.mrb[0].mxu0
    %v1374 = vpop.f32.mrb[0].mxu0
    %v1375 = vadd.f32 %v1023, %v1374
    %v1376 = vpop.f32.mrb[0].mxu0
    %1377 = vdwg.mxu0
    %1378 = vmatprep.subr.bf16.mxu0 0
    %1379 = vmatpush1.bf16.msra.mxu0 %v1169
    %1380 = vmatprep.subr.bf16.mxu0 0
    %1381 = vmatpush1.bf16.msra.mxu0 %v1170
    %1382 = vmatprep.subr.bf16.mxu0 0
    %1383 = vmatpush1.bf16.msra.mxu0 %v1171
    %1384 = vmatprep.subr.bf16.mxu0 0
    %1385 = vmatpush1.bf16.msra.mxu0 %v1172
    %1386 = vmatprep.subr.bf16.mxu0 0
    %1387 = vmatpush1.bf16.msra.mxu0 %v1173
    %1388 = vmatprep.subr.bf16.mxu0 0
    %1389 = vmatpush1.bf16.msra.mxu0 %v1174
    %1390 = vmatprep.subr.bf16.mxu0 0
    %1391 = vmatpush1.bf16.msra.mxu0 %v1175
    %1392 = vmatprep.subr.bf16.mxu0 0
    %1393 = vmatpush1.bf16.msra.mxu0 %v1176
    %1394 = vmatprep.subr.bf16.mxu0 0
    %1395 = vmatpush1.bf16.msra.mxu0 %v1177
    %1396 = vmatprep.subr.bf16.mxu0 0
    %1397 = vmatpush1.bf16.msra.mxu0 %v1178
    %1398 = vmatprep.subr.bf16.mxu0 0
    %1399 = vmatpush1.bf16.msra.mxu0 %v1179
    %1400 = vmatprep.subr.bf16.mxu0 0
    %1401 = vmatpush1.bf16.msra.mxu0 %v1180
    %1402 = vmatprep.subr.bf16.mxu0 0
    %1403 = vmatpush1.bf16.msra.mxu0 %v1181
    %1404 = vmatprep.subr.bf16.mxu0 0
    %1405 = vmatpush1.bf16.msra.mxu0 %v1182
    %1406 = vmatprep.subr.bf16.mxu0 0
    %1407 = vmatpush1.bf16.msra.mxu0 %v1183
    %1408 = vmatprep.subr.bf16.mxu0 0
    %1409 = vmatpush1.bf16.msra.mxu0 %v1184
    %1410 = vmatprep.mubr.bf16.mxu0 %v893
    %1411 = vmatmul.mubr.bf16.gmra.mrb[0].mxu0 %v892
    %v1412 = vpop.f32.mrb[0].mxu0
    %v1413 = vadd.f32 %v1252, %v1412
    %v1414 = vpop.f32.mrb[0].mxu0
    %v1415 = vpop.f32.mrb[0].mxu0
    %v1416 = vadd.f32 %v1255, %v1415
    %v1417 = vpop.f32.mrb[0].mxu0
    %1418 = vmatprep.mubr.bf16.mxu0 %v897
    %1419 = vmatmul.mubr.bf16.gmra.mrb[0].mxu0 %v896
    %v1420 = vpop.f32.mrb[0].mxu0
    %v1421 = vadd.f32 %v1260, %v1420
    %v1422 = vpop.f32.mrb[0].mxu0
    %v1423 = vpop.f32.mrb[0].mxu0
    %v1424 = vadd.f32 %v1263, %v1423
    %v1425 = vpop.f32.mrb[0].mxu0
    %1426 = vmatprep.mubr.bf16.mxu0 %v901
    %1427 = vmatmul.mubr.bf16.gmra.mrb[0].mxu0 %v900
    %v1428 = vpop.f32.mrb[0].mxu0
    %v1429 = vadd.f32 %v1268, %v1428
    %v1430 = vpop.f32.mrb[0].mxu0
    %v1431 = vpop.f32.mrb[0].mxu0
    %v1432 = vadd.f32 %v1271, %v1431
    %v1433 = vpop.f32.mrb[0].mxu0
    %1434 = vmatprep.mubr.bf16.mxu0 %v905
    %1435 = vmatmul.mubr.bf16.gmra.mrb[0].mxu0 %v904
    %v1436 = vpop.f32.mrb[0].mxu0
    %v1437 = vadd.f32 %v1276, %v1436
    %v1438 = vpop.f32.mrb[0].mxu0
    %v1439 = vpop.f32.mrb[0].mxu0
    %v1440 = vadd.f32 %v1279, %v1439
    %v1441 = vpop.f32.mrb[0].mxu0
    %1442 = vmatprep.mubr.bf16.mxu0 %v909
    %1443 = vmatmul.mubr.bf16.gmra.mrb[0].mxu0 %v908
    %v1444 = vpop.f32.mrb[0].mxu0
    %v1445 = vadd.f32 %v1284, %v1444
    %v1446 = vpop.f32.mrb[0].mxu0
    %v1447 = vpop.f32.mrb[0].mxu0
    %v1448 = vadd.f32 %v1287, %v1447
    %v1449 = vpop.f32.mrb[0].mxu0
    %1450 = vmatprep.mubr.bf16.mxu0 %v913
    %1451 = vmatmul.mubr.bf16.gmra.mrb[0].mxu0 %v912
    %v1452 = vpop.f32.mrb[0].mxu0
    %v1453 = vadd.f32 %v1292, %v1452
    %v1454 = vpop.f32.mrb[0].mxu0
    %v1455 = vpop.f32.mrb[0].mxu0
    %v1456 = vadd.f32 %v1295, %v1455
    %v1457 = vpop.f32.mrb[0].mxu0
    %1458 = vmatprep.mubr.bf16.mxu0 %v917
    %1459 = vmatmul.mubr.bf16.gmra.mrb[0].mxu0 %v916
    %v1460 = vpop.f32.mrb[0].mxu0
    %v1461 = vadd.f32 %v1300, %v1460
    %v1462 = vpop.f32.mrb[0].mxu0
    %v1463 = vpop.f32.mrb[0].mxu0
    %v1464 = vadd.f32 %v1303, %v1463
    %v1465 = vpop.f32.mrb[0].mxu0
    %1466 = vmatprep.mubr.bf16.mxu0 %v921
    %1467 = vmatmul.mubr.bf16.gmra.mrb[0].mxu0 %v920
    %v1468 = vpop.f32.mrb[0].mxu0
    %v1469 = vadd.f32 %v1308, %v1468
    %v1470 = vpop.f32.mrb[0].mxu0
    %v1471 = vpop.f32.mrb[0].mxu0
    %v1472 = vadd.f32 %v1311, %v1471
    %v1473 = vpop.f32.mrb[0].mxu0
    %1474 = vmatprep.mubr.bf16.mxu0 %v925
    %1475 = vmatmul.mubr.bf16.gmra.mrb[0].mxu0 %v924
    %v1476 = vpop.f32.mrb[0].mxu0
    %v1477 = vadd.f32 %v1316, %v1476
    %v1478 = vpop.f32.mrb[0].mxu0
    %v1479 = vpop.f32.mrb[0].mxu0
    %v1480 = vadd.f32 %v1319, %v1479
    %v1481 = vpop.f32.mrb[0].mxu0
    %1482 = vmatprep.mubr.bf16.mxu0 %v929
    %1483 = vmatmul.mubr.bf16.gmra.mrb[0].mxu0 %v928
    %v1484 = vpop.f32.mrb[0].mxu0
    %v1485 = vadd.f32 %v1324, %v1484
    %v1486 = vpop.f32.mrb[0].mxu0
    %v1487 = vpop.f32.mrb[0].mxu0
    %v1488 = vadd.f32 %v1327, %v1487
    %v1489 = vpop.f32.mrb[0].mxu0
    %1490 = vmatprep.mubr.bf16.mxu0 %v933
    %1491 = vmatmul.mubr.bf16.gmra.mrb[0].mxu0 %v932
    %v1492 = vpop.f32.mrb[0].mxu0
    %v1493 = vadd.f32 %v1332, %v1492
    %v1494 = vpop.f32.mrb[0].mxu0
    %v1495 = vpop.f32.mrb[0].mxu0
    %v1496 = vadd.f32 %v1335, %v1495
    %v1497 = vpop.f32.mrb[0].mxu0
    %1498 = vmatprep.mubr.bf16.mxu0 %v937
    %1499 = vmatmul.mubr.bf16.gmra.mrb[0].mxu0 %v936
    %v1500 = vpop.f32.mrb[0].mxu0
    %v1501 = vadd.f32 %v1340, %v1500
    %v1502 = vpop.f32.mrb[0].mxu0
    %v1503 = vpop.f32.mrb[0].mxu0
    %v1504 = vadd.f32 %v1343, %v1503
    %v1505 = vpop.f32.mrb[0].mxu0
    %1506 = vmatprep.mubr.bf16.mxu0 %v941
    %1507 = vmatmul.mubr.bf16.gmra.mrb[0].mxu0 %v940
    %v1508 = vpop.f32.mrb[0].mxu0
    %v1509 = vadd.f32 %v1348, %v1508
    %v1510 = vpop.f32.mrb[0].mxu0
    %v1511 = vpop.f32.mrb[0].mxu0
    %v1512 = vadd.f32 %v1351, %v1511
    %v1513 = vpop.f32.mrb[0].mxu0
    %1514 = vmatprep.mubr.bf16.mxu0 %v945
    %1515 = vmatmul.mubr.bf16.gmra.mrb[0].mxu0 %v944
    %v1516 = vpop.f32.mrb[0].mxu0
    %v1517 = vadd.f32 %v1356, %v1516
    %v1518 = vpop.f32.mrb[0].mxu0
    %v1519 = vpop.f32.mrb[0].mxu0
    %v1520 = vadd.f32 %v1359, %v1519
    %v1521 = vpop.f32.mrb[0].mxu0
    %1522 = vmatprep.mubr.bf16.mxu0 %v949
    %1523 = vmatmul.mubr.bf16.gmra.mrb[0].mxu0 %v948
    %v1524 = vpop.f32.mrb[0].mxu0
    %v1525 = vadd.f32 %v1364, %v1524
    %v1526 = vpop.f32.mrb[0].mxu0
    %v1527 = vpop.f32.mrb[0].mxu0
    %v1528 = vadd.f32 %v1367, %v1527
    %v1529 = vpop.f32.mrb[0].mxu0
    %1530 = vmatprep.mubr.bf16.mxu0 %v953
    %1531 = vmatmul.mubr.bf16.gmra.mrb[0].mxu0 %v952
    %v1532 = vpop.f32.mrb[0].mxu0
    %v1533 = vadd.f32 %v1372, %v1532
    %v1534 = vpop.f32.mrb[0].mxu0
    %v1535 = vpop.f32.mrb[0].mxu0
    %v1536 = vadd.f32 %v1375, %v1535
    %v1537 = vpop.f32.mrb[0].mxu0
    %1538 = vdwg.mxu0
    %v1539 = vmax.f32 %v1413, 0.0
    %v1540 = vmax.f32 %v1416, 0.0
    %v1541 = vmax.f32 %v1421, 0.0
    %v1542 = vmax.f32 %v1424, 0.0
    %v1543 = vmax.f32 %v1429, 0.0
    %v1544 = vmax.f32 %v1432, 0.0
    %v1545 = vmax.f32 %v1437, 0.0
    %v1546 = vmax.f32 %v1440, 0.0
    %v1547 = vmax.f32 %v1445, 0.0
    %v1548 = vmax.f32 %v1448, 0.0
    %v1549 = vmax.f32 %v1453, 0.0
    %v1550 = vmax.f32 %v1456, 0.0
    %v1551 = vmax.f32 %v1461, 0.0
    %v1552 = vmax.f32 %v1464, 0.0
    %v1553 = vmax.f32 %v1469, 0.0
    %v1554 = vmax.f32 %v1472, 0.0
    %v1555 = vmax.f32 %v1477, 0.0
    %v1556 = vmax.f32 %v1480, 0.0
    %v1557 = vmax.f32 %v1485, 0.0
    %v1558 = vmax.f32 %v1488, 0.0
    %v1559 = vmax.f32 %v1493, 0.0
    %v1560 = vmax.f32 %v1496, 0.0
    %v1561 = vmax.f32 %v1501, 0.0
    %v1562 = vmax.f32 %v1504, 0.0
    %v1563 = vmax.f32 %v1509, 0.0
    %v1564 = vmax.f32 %v1512, 0.0
    %v1565 = vmax.f32 %v1517, 0.0
    %v1566 = vmax.f32 %v1520, 0.0
    %v1567 = vmax.f32 %v1525, 0.0
    %v1568 = vmax.f32 %v1528, 0.0
    %v1569 = vmax.f32 %v1533, 0.0
    %v1570 = vmax.f32 %v1536, 0.0
    %v1571 = vpack.c.bf16 %v1540, %v1539
    %v1572 = vpack.c.bf16 %v1542, %v1541
    %v1573 = vpack.c.bf16 %v1544, %v1543
    %v1574 = vpack.c.bf16 %v1546, %v1545
    %v1575 = vpack.c.bf16 %v1548, %v1547
    %v1576 = vpack.c.bf16 %v1550, %v1549
    %v1577 = vpack.c.bf16 %v1552, %v1551
    %v1578 = vpack.c.bf16 %v1554, %v1553
    %v1579 = vpack.c.bf16 %v1556, %v1555
    %v1580 = vpack.c.bf16 %v1558, %v1557
    %v1581 = vpack.c.bf16 %v1560, %v1559
    %v1582 = vpack.c.bf16 %v1562, %v1561
    %v1583 = vpack.c.bf16 %v1564, %v1563
    %v1584 = vpack.c.bf16 %v1566, %v1565
    %v1585 = vpack.c.bf16 %v1568, %v1567
    %v1586 = vpack.c.bf16 %v1570, %v1569
    %v1587 = vld [vmem:[#allocation10] sm:$0xff]
    %v1588 = vld [vmem:[#allocation10 + $0x8] sm:$0xff]
    %v1589 = vld [vmem:[#allocation10 + $0x10] sm:$0xff]
    %v1590 = vld [vmem:[#allocation10 + $0x18] sm:$0xff]
    %v1591 = vld [vmem:[#allocation10 + $0x20] sm:$0xff]
    %v1592 = vld [vmem:[#allocation10 + $0x28] sm:$0xff]
    %v1593 = vld [vmem:[#allocation10 + $0x30] sm:$0xff]
    %v1594 = vld [vmem:[#allocation10 + $0x38] sm:$0xff]
    %v1595 = vld [vmem:[#allocation10 + $0x40] sm:$0xff]
    %v1596 = vld [vmem:[#allocation10 + $0x48] sm:$0xff]
    %v1597 = vld [vmem:[#allocation10 + $0x50] sm:$0xff]
    %v1598 = vld [vmem:[#allocation10 + $0x58] sm:$0xff]
    %v1599 = vld [vmem:[#allocation10 + $0x60] sm:$0xff]
    %v1600 = vld [vmem:[#allocation10 + $0x68] sm:$0xff]
    %v1601 = vld [vmem:[#allocation10 + $0x70] sm:$0xff]
    %v1602 = vld [vmem:[#allocation10 + $0x78] sm:$0xff]
    %v1603 = vld [vmem:[#allocation10 + $0x80] sm:$0xff]
    %v1604 = vld [vmem:[#allocation10 + $0x88] sm:$0xff]
    %v1605 = vld [vmem:[#allocation10 + $0x90] sm:$0xff]
    %v1606 = vld [vmem:[#allocation10 + $0x98] sm:$0xff]
    %v1607 = vld [vmem:[#allocation10 + $0xa0] sm:$0xff]
    %v1608 = vld [vmem:[#allocation10 + $0xa8] sm:$0xff]
    %v1609 = vld [vmem:[#allocation10 + $0xb0] sm:$0xff]
    %v1610 = vld [vmem:[#allocation10 + $0xb8] sm:$0xff]
    %v1611 = vld [vmem:[#allocation10 + $0xc0] sm:$0xff]
    %v1612 = vld [vmem:[#allocation10 + $0xc8] sm:$0xff]
    %v1613 = vld [vmem:[#allocation10 + $0xd0] sm:$0xff]
    %v1614 = vld [vmem:[#allocation10 + $0xd8] sm:$0xff]
    %v1615 = vld [vmem:[#allocation10 + $0xe0] sm:$0xff]
    %v1616 = vld [vmem:[#allocation10 + $0xe8] sm:$0xff]
    %v1617 = vld [vmem:[#allocation10 + $0xf0] sm:$0xff]
    %v1618 = vld [vmem:[#allocation10 + $0xf8] sm:$0xff]
    %v1619 = vld [vmem:[%s6] sm:$0xf]
    %v1621 = vlaneseq
    %v1622 = vshrl.u32 %v1621, 7
    %v1623 = vsub.s32 0, %v1622
    %v1624 = vrot.slane %v1619, %v1623
    %v1625 = vlaneseq
    %v1626 = vshrl.u32 %v1625, 7
    %v1627 = vsub.s32 1, %v1626
    %v1628 = vrot.slane %v1619, %v1627
    %v1629 = vlaneseq
    %v1630 = vshrl.u32 %v1629, 7
    %v1631 = vsub.s32 2, %v1630
    %v1632 = vrot.slane %v1619, %v1631
    %v1633 = vlaneseq
    %v1634 = vshrl.u32 %v1633, 7
    %v1635 = vsub.s32 3, %v1634
    %v1636 = vrot.slane %v1619, %v1635
    %v1673 = vunpack.c.l.b16 %v1587
    %v1674 = vunpack.c.h.b16 %v1587
    %v1675 = vunpack.c.l.b16 %v1588
    %v1676 = vunpack.c.h.b16 %v1588
    %v1677 = vunpack.c.l.b16 %v1589
    %v1678 = vunpack.c.h.b16 %v1589
    %v1679 = vunpack.c.l.b16 %v1590
    %v1680 = vunpack.c.h.b16 %v1590
    %v1681 = vunpack.c.l.b16 %v1591
    %v1682 = vunpack.c.h.b16 %v1591
    %v1683 = vunpack.c.l.b16 %v1592
    %v1684 = vunpack.c.h.b16 %v1592
    %v1685 = vunpack.c.l.b16 %v1593
    %v1686 = vunpack.c.h.b16 %v1593
    %v1687 = vunpack.c.l.b16 %v1594
    %v1688 = vunpack.c.h.b16 %v1594
    %v1689 = vunpack.c.l.b16 %v1595
    %v1690 = vunpack.c.h.b16 %v1595
    %v1691 = vunpack.c.l.b16 %v1596
    %v1692 = vunpack.c.h.b16 %v1596
    %v1693 = vunpack.c.l.b16 %v1597
    %v1694 = vunpack.c.h.b16 %v1597
    %v1695 = vunpack.c.l.b16 %v1598
    %v1696 = vunpack.c.h.b16 %v1598
    %v1697 = vunpack.c.l.b16 %v1599
    %v1698 = vunpack.c.h.b16 %v1599
    %v1699 = vunpack.c.l.b16 %v1600
    %v1700 = vunpack.c.h.b16 %v1600
    %v1701 = vunpack.c.l.b16 %v1601
    %v1702 = vunpack.c.h.b16 %v1601
    %v1703 = vunpack.c.l.b16 %v1602
    %v1704 = vunpack.c.h.b16 %v1602
    %v1705 = vunpack.c.l.b16 %v1603
    %v1706 = vunpack.c.h.b16 %v1603
    %v1707 = vunpack.c.l.b16 %v1604
    %v1708 = vunpack.c.h.b16 %v1604
    %v1709 = vunpack.c.l.b16 %v1605
    %v1710 = vunpack.c.h.b16 %v1605
    %v1711 = vunpack.c.l.b16 %v1606
    %v1712 = vunpack.c.h.b16 %v1606
    %v1713 = vunpack.c.l.b16 %v1607
    %v1714 = vunpack.c.h.b16 %v1607
    %v1715 = vunpack.c.l.b16 %v1608
    %v1716 = vunpack.c.h.b16 %v1608
    %v1717 = vunpack.c.l.b16 %v1609
    %v1718 = vunpack.c.h.b16 %v1609
    %v1719 = vunpack.c.l.b16 %v1610
    %v1720 = vunpack.c.h.b16 %v1610
    %v1721 = vunpack.c.l.b16 %v1611
    %v1722 = vunpack.c.h.b16 %v1611
    %v1723 = vunpack.c.l.b16 %v1612
    %v1724 = vunpack.c.h.b16 %v1612
    %v1725 = vunpack.c.l.b16 %v1613
    %v1726 = vunpack.c.h.b16 %v1613
    %v1727 = vunpack.c.l.b16 %v1614
    %v1728 = vunpack.c.h.b16 %v1614
    %v1729 = vunpack.c.l.b16 %v1615
    %v1730 = vunpack.c.h.b16 %v1615
    %v1731 = vunpack.c.l.b16 %v1616
    %v1732 = vunpack.c.h.b16 %v1616
    %v1733 = vunpack.c.l.b16 %v1617
    %v1734 = vunpack.c.h.b16 %v1617
    %v1735 = vunpack.c.l.b16 %v1618
    %v1736 = vunpack.c.h.b16 %v1618
    %v1737 = vpack.c.b16 %v1677, %v1673
    %v1738 = vpack.c.b16 %v1678, %v1674
    %v1739 = vpack.c.b16 %v1679, %v1675
    %v1740 = vpack.c.b16 %v1680, %v1676
    %v1741 = vpack.c.b16 %v1685, %v1681
    %v1742 = vpack.c.b16 %v1686, %v1682
    %v1743 = vpack.c.b16 %v1687, %v1683
    %v1744 = vpack.c.b16 %v1688, %v1684
    %v1745 = vpack.c.b16 %v1693, %v1689
    %v1746 = vpack.c.b16 %v1694, %v1690
    %v1747 = vpack.c.b16 %v1695, %v1691
    %v1748 = vpack.c.b16 %v1696, %v1692
    %v1749 = vpack.c.b16 %v1701, %v1697
    %v1750 = vpack.c.b16 %v1702, %v1698
    %v1751 = vpack.c.b16 %v1703, %v1699
    %v1752 = vpack.c.b16 %v1704, %v1700
    %v1753 = vpack.c.b16 %v1709, %v1705
    %v1754 = vpack.c.b16 %v1710, %v1706
    %v1755 = vpack.c.b16 %v1711, %v1707
    %v1756 = vpack.c.b16 %v1712, %v1708
    %v1757 = vpack.c.b16 %v1717, %v1713
    %v1758 = vpack.c.b16 %v1718, %v1714
    %v1759 = vpack.c.b16 %v1719, %v1715
    %v1760 = vpack.c.b16 %v1720, %v1716
    %v1761 = vpack.c.b16 %v1725, %v1721
    %v1762 = vpack.c.b16 %v1726, %v1722
    %v1763 = vpack.c.b16 %v1727, %v1723
    %v1764 = vpack.c.b16 %v1728, %v1724
    %v1765 = vpack.c.b16 %v1733, %v1729
    %v1766 = vpack.c.b16 %v1734, %v1730
    %v1767 = vpack.c.b16 %v1735, %v1731
    %v1768 = vpack.c.b16 %v1736, %v1732
    %1801 = vmatprep.subr.bf16.mxu0 %v1738
    %1802 = vmatpush1.bf16.msra.mxu0 %v1737
    %1803 = vmatprep.subr.bf16.mxu0 %v1742
    %1804 = vmatpush1.bf16.msra.mxu0 %v1741
    %1805 = vmatprep.subr.bf16.mxu0 %v1746
    %1806 = vmatpush1.bf16.msra.mxu0 %v1745
    %1807 = vmatprep.subr.bf16.mxu0 %v1750
    %1808 = vmatpush1.bf16.msra.mxu0 %v1749
    %1809 = vmatprep.subr.bf16.mxu0 %v1754
    %1810 = vmatpush1.bf16.msra.mxu0 %v1753
    %1811 = vmatprep.subr.bf16.mxu0 %v1758
    %1812 = vmatpush1.bf16.msra.mxu0 %v1757
    %1813 = vmatprep.subr.bf16.mxu0 %v1762
    %1814 = vmatpush1.bf16.msra.mxu0 %v1761
    %1815 = vmatprep.subr.bf16.mxu0 %v1766
    %1816 = vmatpush1.bf16.msra.mxu0 %v1765
    %1817 = vmatprep.subr.bf16.mxu0 0
    %1818 = vmatpush1.bf16.msra.mxu0 0
    %1819 = vmatprep.subr.bf16.mxu0 0
    %1820 = vmatpush1.bf16.msra.mxu0 0
    %1821 = vmatprep.subr.bf16.mxu0 0
    %1822 = vmatpush1.bf16.msra.mxu0 0
    %1823 = vmatprep.subr.bf16.mxu0 0
    %1824 = vmatpush1.bf16.msra.mxu0 0
    %1825 = vmatprep.subr.bf16.mxu0 0
    %1826 = vmatpush1.bf16.msra.mxu0 0
    %1827 = vmatprep.subr.bf16.mxu0 0
    %1828 = vmatpush1.bf16.msra.mxu0 0
    %1829 = vmatprep.subr.bf16.mxu0 0
    %1830 = vmatpush1.bf16.msra.mxu0 0
    %1831 = vmatprep.subr.bf16.mxu0 0
    %1832 = vmatpush1.bf16.msra.mxu0 0
    %1833 = vmatprep.mubr.bf16.mxu0 0
    %1834 = vmatmul.mubr.bf16.gmra.mrb[0].mxu0 %v1571
    %v1835 = vpop.f32.mrb[0].mxu0
    %v1836 = vadd.f32 %v1624, %v1835
    %v1837 = vpop.f32.mrb[0].mxu0
    %v1838 = vadd.f32 %v1628, %v1837
    %v1839 = vpop.f32.mrb[0].mxu0
    %v1840 = vadd.f32 %v1624, %v1839
    %v1841 = vpop.f32.mrb[0].mxu0
    %v1842 = vadd.f32 %v1628, %v1841
    %1843 = vmatprep.mubr.bf16.mxu0 0
    %1844 = vmatmul.mubr.bf16.gmra.mrb[0].mxu0 %v1572
    %v1845 = vpop.f32.mrb[0].mxu0
    %v1846 = vadd.f32 %v1624, %v1845
    %v1847 = vpop.f32.mrb[0].mxu0
    %v1848 = vadd.f32 %v1628, %v1847
    %v1849 = vpop.f32.mrb[0].mxu0
    %v1850 = vadd.f32 %v1624, %v1849
    %v1851 = vpop.f32.mrb[0].mxu0
    %v1852 = vadd.f32 %v1628, %v1851
    %1853 = vmatprep.mubr.bf16.mxu0 0
    %1854 = vmatmul.mubr.bf16.gmra.mrb[0].mxu0 %v1573
    %v1855 = vpop.f32.mrb[0].mxu0
    %v1856 = vadd.f32 %v1624, %v1855
    %v1857 = vpop.f32.mrb[0].mxu0
    %v1858 = vadd.f32 %v1628, %v1857
    %v1859 = vpop.f32.mrb[0].mxu0
    %v1860 = vadd.f32 %v1624, %v1859
    %v1861 = vpop.f32.mrb[0].mxu0
    %v1862 = vadd.f32 %v1628, %v1861
    %1863 = vmatprep.mubr.bf16.mxu0 0
    %1864 = vmatmul.mubr.bf16.gmra.mrb[0].mxu0 %v1574
    %v1865 = vpop.f32.mrb[0].mxu0
    %v1866 = vadd.f32 %v1624, %v1865
    %v1867 = vpop.f32.mrb[0].mxu0
    %v1868 = vadd.f32 %v1628, %v1867
    %v1869 = vpop.f32.mrb[0].mxu0
    %v1870 = vadd.f32 %v1624, %v1869
    %v1871 = vpop.f32.mrb[0].mxu0
    %v1872 = vadd.f32 %v1628, %v1871
    %1873 = vmatprep.mubr.bf16.mxu0 0
    %1874 = vmatmul.mubr.bf16.gmra.mrb[0].mxu0 %v1575
    %v1875 = vpop.f32.mrb[0].mxu0
    %v1876 = vadd.f32 %v1624, %v1875
    %v1877 = vpop.f32.mrb[0].mxu0
    %v1878 = vadd.f32 %v1628, %v1877
    %v1879 = vpop.f32.mrb[0].mxu0
    %v1880 = vadd.f32 %v1624, %v1879
    %v1881 = vpop.f32.mrb[0].mxu0
    %v1882 = vadd.f32 %v1628, %v1881
    %1883 = vmatprep.mubr.bf16.mxu0 0
    %1884 = vmatmul.mubr.bf16.gmra.mrb[0].mxu0 %v1576
    %v1885 = vpop.f32.mrb[0].mxu0
    %v1886 = vadd.f32 %v1624, %v1885
    %v1887 = vpop.f32.mrb[0].mxu0
    %v1888 = vadd.f32 %v1628, %v1887
    %v1889 = vpop.f32.mrb[0].mxu0
    %v1890 = vadd.f32 %v1624, %v1889
    %v1891 = vpop.f32.mrb[0].mxu0
    %v1892 = vadd.f32 %v1628, %v1891
    %1893 = vmatprep.mubr.bf16.mxu0 0
    %1894 = vmatmul.mubr.bf16.gmra.mrb[0].mxu0 %v1577
    %v1895 = vpop.f32.mrb[0].mxu0
    %v1896 = vadd.f32 %v1624, %v1895
    %v1897 = vpop.f32.mrb[0].mxu0
    %v1898 = vadd.f32 %v1628, %v1897
    %v1899 = vpop.f32.mrb[0].mxu0
    %v1900 = vadd.f32 %v1624, %v1899
    %v1901 = vpop.f32.mrb[0].mxu0
    %v1902 = vadd.f32 %v1628, %v1901
    %1903 = vmatprep.mubr.bf16.mxu0 0
    %1904 = vmatmul.mubr.bf16.gmra.mrb[0].mxu0 %v1578
    %v1905 = vpop.f32.mrb[0].mxu0
    %v1906 = vadd.f32 %v1624, %v1905
    %v1907 = vpop.f32.mrb[0].mxu0
    %v1908 = vadd.f32 %v1628, %v1907
    %v1909 = vpop.f32.mrb[0].mxu0
    %v1910 = vadd.f32 %v1624, %v1909
    %v1911 = vpop.f32.mrb[0].mxu0
    %v1912 = vadd.f32 %v1628, %v1911
    %1913 = vmatprep.mubr.bf16.mxu0 0
    %1914 = vmatmul.mubr.bf16.gmra.mrb[0].mxu0 %v1579
    %v1915 = vpop.f32.mrb[0].mxu0
    %v1916 = vadd.f32 %v1624, %v1915
    %v1917 = vpop.f32.mrb[0].mxu0
    %v1918 = vadd.f32 %v1628, %v1917
    %v1919 = vpop.f32.mrb[0].mxu0
    %v1920 = vadd.f32 %v1624, %v1919
    %v1921 = vpop.f32.mrb[0].mxu0
    %v1922 = vadd.f32 %v1628, %v1921
    %1923 = vmatprep.mubr.bf16.mxu0 0
    %1924 = vmatmul.mubr.bf16.gmra.mrb[0].mxu0 %v1580
    %v1925 = vpop.f32.mrb[0].mxu0
    %v1926 = vadd.f32 %v1624, %v1925
    %v1927 = vpop.f32.mrb[0].mxu0
    %v1928 = vadd.f32 %v1628, %v1927
    %v1929 = vpop.f32.mrb[0].mxu0
    %v1930 = vadd.f32 %v1624, %v1929
    %v1931 = vpop.f32.mrb[0].mxu0
    %v1932 = vadd.f32 %v1628, %v1931
    %1933 = vmatprep.mubr.bf16.mxu0 0
    %1934 = vmatmul.mubr.bf16.gmra.mrb[0].mxu0 %v1581
    %v1935 = vpop.f32.mrb[0].mxu0
    %v1936 = vadd.f32 %v1624, %v1935
    %v1937 = vpop.f32.mrb[0].mxu0
    %v1938 = vadd.f32 %v1628, %v1937
    %v1939 = vpop.f32.mrb[0].mxu0
    %v1940 = vadd.f32 %v1624, %v1939
    %v1941 = vpop.f32.mrb[0].mxu0
    %v1942 = vadd.f32 %v1628, %v1941
    %1943 = vmatprep.mubr.bf16.mxu0 0
    %1944 = vmatmul.mubr.bf16.gmra.mrb[0].mxu0 %v1582
    %v1945 = vpop.f32.mrb[0].mxu0
    %v1946 = vadd.f32 %v1624, %v1945
    %v1947 = vpop.f32.mrb[0].mxu0
    %v1948 = vadd.f32 %v1628, %v1947
    %v1949 = vpop.f32.mrb[0].mxu0
    %v1950 = vadd.f32 %v1624, %v1949
    %v1951 = vpop.f32.mrb[0].mxu0
    %v1952 = vadd.f32 %v1628, %v1951
    %1953 = vmatprep.mubr.bf16.mxu0 0
    %1954 = vmatmul.mubr.bf16.gmra.mrb[0].mxu0 %v1583
    %v1955 = vpop.f32.mrb[0].mxu0
    %v1956 = vadd.f32 %v1624, %v1955
    %v1957 = vpop.f32.mrb[0].mxu0
    %v1958 = vadd.f32 %v1628, %v1957
    %v1959 = vpop.f32.mrb[0].mxu0
    %v1960 = vadd.f32 %v1624, %v1959
    %v1961 = vpop.f32.mrb[0].mxu0
    %v1962 = vadd.f32 %v1628, %v1961
    %1963 = vmatprep.mubr.bf16.mxu0 0
    %1964 = vmatmul.mubr.bf16.gmra.mrb[0].mxu0 %v1584
    %v1965 = vpop.f32.mrb[0].mxu0
    %v1966 = vadd.f32 %v1624, %v1965
    %v1967 = vpop.f32.mrb[0].mxu0
    %v1968 = vadd.f32 %v1628, %v1967
    %v1969 = vpop.f32.mrb[0].mxu0
    %v1970 = vadd.f32 %v1624, %v1969
    %v1971 = vpop.f32.mrb[0].mxu0
    %v1972 = vadd.f32 %v1628, %v1971
    %1973 = vmatprep.mubr.bf16.mxu0 0
    %1974 = vmatmul.mubr.bf16.gmra.mrb[0].mxu0 %v1585
    %v1975 = vpop.f32.mrb[0].mxu0
    %v1976 = vadd.f32 %v1624, %v1975
    %v1977 = vpop.f32.mrb[0].mxu0
    %v1978 = vadd.f32 %v1628, %v1977
    %v1979 = vpop.f32.mrb[0].mxu0
    %v1980 = vadd.f32 %v1624, %v1979
    %v1981 = vpop.f32.mrb[0].mxu0
    %v1982 = vadd.f32 %v1628, %v1981
    %1983 = vmatprep.mubr.bf16.mxu0 0
    %1984 = vmatmul.mubr.bf16.gmra.mrb[0].mxu0 %v1586
    %v1985 = vpop.f32.mrb[0].mxu0
    %v1986 = vadd.f32 %v1624, %v1985
    %v1987 = vpop.f32.mrb[0].mxu0
    %v1988 = vadd.f32 %v1628, %v1987
    %v1989 = vpop.f32.mrb[0].mxu0
    %v1990 = vadd.f32 %v1624, %v1989
    %v1991 = vpop.f32.mrb[0].mxu0
    %v1992 = vadd.f32 %v1628, %v1991
    %1993 = vdwg.mxu0
    %1994 = vmatprep.subr.bf16.mxu0 %v1740
    %1995 = vmatpush1.bf16.msra.mxu0 %v1739
    %1996 = vmatprep.subr.bf16.mxu0 %v1744
    %1997 = vmatpush1.bf16.msra.mxu0 %v1743
    %1998 = vmatprep.subr.bf16.mxu0 %v1748
    %1999 = vmatpush1.bf16.msra.mxu0 %v1747
    %2000 = vmatprep.subr.bf16.mxu0 %v1752
    %2001 = vmatpush1.bf16.msra.mxu0 %v1751
    %2002 = vmatprep.subr.bf16.mxu0 %v1756
    %2003 = vmatpush1.bf16.msra.mxu0 %v1755
    %2004 = vmatprep.subr.bf16.mxu0 %v1760
    %2005 = vmatpush1.bf16.msra.mxu0 %v1759
    %2006 = vmatprep.subr.bf16.mxu0 %v1764
    %2007 = vmatpush1.bf16.msra.mxu0 %v1763
    %2008 = vmatprep.subr.bf16.mxu0 %v1768
    %2009 = vmatpush1.bf16.msra.mxu0 %v1767
    %2010 = vmatprep.subr.bf16.mxu0 0
    %2011 = vmatpush1.bf16.msra.mxu0 0
    %2012 = vmatprep.subr.bf16.mxu0 0
    %2013 = vmatpush1.bf16.msra.mxu0 0
    %2014 = vmatprep.subr.bf16.mxu0 0
    %2015 = vmatpush1.bf16.msra.mxu0 0
    %2016 = vmatprep.subr.bf16.mxu0 0
    %2017 = vmatpush1.bf16.msra.mxu0 0
    %2018 = vmatprep.subr.bf16.mxu0 0
    %2019 = vmatpush1.bf16.msra.mxu0 0
    %2020 = vmatprep.subr.bf16.mxu0 0
    %2021 = vmatpush1.bf16.msra.mxu0 0
    %2022 = vmatprep.subr.bf16.mxu0 0
    %2023 = vmatpush1.bf16.msra.mxu0 0
    %2024 = vmatprep.subr.bf16.mxu0 0
    %2025 = vmatpush1.bf16.msra.mxu0 0
    %2026 = vmatprep.mubr.bf16.mxu0 0
    %2027 = vmatmul.mubr.bf16.gmra.mrb[0].mxu0 %v1571
    %v2028 = vpop.f32.mrb[0].mxu0
    %v2029 = vadd.f32 %v1632, %v2028
    %v2030 = vpop.f32.mrb[0].mxu0
    %v2031 = vadd.f32 %v1636, %v2030
    %v2032 = vpop.f32.mrb[0].mxu0
    %v2033 = vadd.f32 %v1632, %v2032
    %v2034 = vpop.f32.mrb[0].mxu0
    %v2035 = vadd.f32 %v1636, %v2034
    %2036 = vmatprep.mubr.bf16.mxu0 0
    %2037 = vmatmul.mubr.bf16.gmra.mrb[0].mxu0 %v1572
    %v2038 = vpop.f32.mrb[0].mxu0
    %v2039 = vadd.f32 %v1632, %v2038
    %v2040 = vpop.f32.mrb[0].mxu0
    %v2041 = vadd.f32 %v1636, %v2040
    %v2042 = vpop.f32.mrb[0].mxu0
    %v2043 = vadd.f32 %v1632, %v2042
    %v2044 = vpop.f32.mrb[0].mxu0
    %v2045 = vadd.f32 %v1636, %v2044
    %2046 = vmatprep.mubr.bf16.mxu0 0
    %2047 = vmatmul.mubr.bf16.gmra.mrb[0].mxu0 %v1573
    %v2048 = vpop.f32.mrb[0].mxu0
    %v2049 = vadd.f32 %v1632, %v2048
    %v2050 = vpop.f32.mrb[0].mxu0
    %v2051 = vadd.f32 %v1636, %v2050
    %v2052 = vpop.f32.mrb[0].mxu0
    %v2053 = vadd.f32 %v1632, %v2052
    %v2054 = vpop.f32.mrb[0].mxu0
    %v2055 = vadd.f32 %v1636, %v2054
    %2056 = vmatprep.mubr.bf16.mxu0 0
    %2057 = vmatmul.mubr.bf16.gmra.mrb[0].mxu0 %v1574
    %v2058 = vpop.f32.mrb[0].mxu0
    %v2059 = vadd.f32 %v1632, %v2058
    %v2060 = vpop.f32.mrb[0].mxu0
    %v2061 = vadd.f32 %v1636, %v2060
    %v2062 = vpop.f32.mrb[0].mxu0
    %v2063 = vadd.f32 %v1632, %v2062
    %v2064 = vpop.f32.mrb[0].mxu0
    %v2065 = vadd.f32 %v1636, %v2064
    %2066 = vmatprep.mubr.bf16.mxu0 0
    %2067 = vmatmul.mubr.bf16.gmra.mrb[0].mxu0 %v1575
    %v2068 = vpop.f32.mrb[0].mxu0
    %v2069 = vadd.f32 %v1632, %v2068
    %v2070 = vpop.f32.mrb[0].mxu0
    %v2071 = vadd.f32 %v1636, %v2070
    %v2072 = vpop.f32.mrb[0].mxu0
    %v2073 = vadd.f32 %v1632, %v2072
    %v2074 = vpop.f32.mrb[0].mxu0
    %v2075 = vadd.f32 %v1636, %v2074
    %2076 = vmatprep.mubr.bf16.mxu0 0
    %2077 = vmatmul.mubr.bf16.gmra.mrb[0].mxu0 %v1576
    %v2078 = vpop.f32.mrb[0].mxu0
    %v2079 = vadd.f32 %v1632, %v2078
    %v2080 = vpop.f32.mrb[0].mxu0
    %v2081 = vadd.f32 %v1636, %v2080
    %v2082 = vpop.f32.mrb[0].mxu0
    %v2083 = vadd.f32 %v1632, %v2082
    %v2084 = vpop.f32.mrb[0].mxu0
    %v2085 = vadd.f32 %v1636, %v2084
    %2086 = vmatprep.mubr.bf16.mxu0 0
    %2087 = vmatmul.mubr.bf16.gmra.mrb[0].mxu0 %v1577
    %v2088 = vpop.f32.mrb[0].mxu0
    %v2089 = vadd.f32 %v1632, %v2088
    %v2090 = vpop.f32.mrb[0].mxu0
    %v2091 = vadd.f32 %v1636, %v2090
    %v2092 = vpop.f32.mrb[0].mxu0
    %v2093 = vadd.f32 %v1632, %v2092
    %v2094 = vpop.f32.mrb[0].mxu0
    %v2095 = vadd.f32 %v1636, %v2094
    %2096 = vmatprep.mubr.bf16.mxu0 0
    %2097 = vmatmul.mubr.bf16.gmra.mrb[0].mxu0 %v1578
    %v2098 = vpop.f32.mrb[0].mxu0
    %v2099 = vadd.f32 %v1632, %v2098
    %v2100 = vpop.f32.mrb[0].mxu0
    %v2101 = vadd.f32 %v1636, %v2100
    %v2102 = vpop.f32.mrb[0].mxu0
    %v2103 = vadd.f32 %v1632, %v2102
    %v2104 = vpop.f32.mrb[0].mxu0
    %v2105 = vadd.f32 %v1636, %v2104
    %2106 = vmatprep.mubr.bf16.mxu0 0
    %2107 = vmatmul.mubr.bf16.gmra.mrb[0].mxu0 %v1579
    %v2108 = vpop.f32.mrb[0].mxu0
    %v2109 = vadd.f32 %v1632, %v2108
    %v2110 = vpop.f32.mrb[0].mxu0
    %v2111 = vadd.f32 %v1636, %v2110
    %v2112 = vpop.f32.mrb[0].mxu0
    %v2113 = vadd.f32 %v1632, %v2112
    %v2114 = vpop.f32.mrb[0].mxu0
    %v2115 = vadd.f32 %v1636, %v2114
    %2116 = vmatprep.mubr.bf16.mxu0 0
    %2117 = vmatmul.mubr.bf16.gmra.mrb[0].mxu0 %v1580
    %v2118 = vpop.f32.mrb[0].mxu0
    %v2119 = vadd.f32 %v1632, %v2118
    %v2120 = vpop.f32.mrb[0].mxu0
    %v2121 = vadd.f32 %v1636, %v2120
    %v2122 = vpop.f32.mrb[0].mxu0
    %v2123 = vadd.f32 %v1632, %v2122
    %v2124 = vpop.f32.mrb[0].mxu0
    %v2125 = vadd.f32 %v1636, %v2124
    %2126 = vmatprep.mubr.bf16.mxu0 0
    %2127 = vmatmul.mubr.bf16.gmra.mrb[0].mxu0 %v1581
    %v2128 = vpop.f32.mrb[0].mxu0
    %v2129 = vadd.f32 %v1632, %v2128
    %v2130 = vpop.f32.mrb[0].mxu0
    %v2131 = vadd.f32 %v1636, %v2130
    %v2132 = vpop.f32.mrb[0].mxu0
    %v2133 = vadd.f32 %v1632, %v2132
    %v2134 = vpop.f32.mrb[0].mxu0
    %v2135 = vadd.f32 %v1636, %v2134
    %2136 = vmatprep.mubr.bf16.mxu0 0
    %2137 = vmatmul.mubr.bf16.gmra.mrb[0].mxu0 %v1582
    %v2138 = vpop.f32.mrb[0].mxu0
    %v2139 = vadd.f32 %v1632, %v2138
    %v2140 = vpop.f32.mrb[0].mxu0
    %v2141 = vadd.f32 %v1636, %v2140
    %v2142 = vpop.f32.mrb[0].mxu0
    %v2143 = vadd.f32 %v1632, %v2142
    %v2144 = vpop.f32.mrb[0].mxu0
    %v2145 = vadd.f32 %v1636, %v2144
    %2146 = vmatprep.mubr.bf16.mxu0 0
    %2147 = vmatmul.mubr.bf16.gmra.mrb[0].mxu0 %v1583
    %v2148 = vpop.f32.mrb[0].mxu0
    %v2149 = vadd.f32 %v1632, %v2148
    %v2150 = vpop.f32.mrb[0].mxu0
    %v2151 = vadd.f32 %v1636, %v2150
    %v2152 = vpop.f32.mrb[0].mxu0
    %v2153 = vadd.f32 %v1632, %v2152
    %v2154 = vpop.f32.mrb[0].mxu0
    %v2155 = vadd.f32 %v1636, %v2154
    %2156 = vmatprep.mubr.bf16.mxu0 0
    %2157 = vmatmul.mubr.bf16.gmra.mrb[0].mxu0 %v1584
    %v2158 = vpop.f32.mrb[0].mxu0
    %v2159 = vadd.f32 %v1632, %v2158
    %v2160 = vpop.f32.mrb[0].mxu0
    %v2161 = vadd.f32 %v1636, %v2160
    %v2162 = vpop.f32.mrb[0].mxu0
    %v2163 = vadd.f32 %v1632, %v2162
    %v2164 = vpop.f32.mrb[0].mxu0
    %v2165 = vadd.f32 %v1636, %v2164
    %2166 = vmatprep.mubr.bf16.mxu0 0
    %2167 = vmatmul.mubr.bf16.gmra.mrb[0].mxu0 %v1585
    %v2168 = vpop.f32.mrb[0].mxu0
    %v2169 = vadd.f32 %v1632, %v2168
    %v2170 = vpop.f32.mrb[0].mxu0
    %v2171 = vadd.f32 %v1636, %v2170
    %v2172 = vpop.f32.mrb[0].mxu0
    %v2173 = vadd.f32 %v1632, %v2172
    %v2174 = vpop.f32.mrb[0].mxu0
    %v2175 = vadd.f32 %v1636, %v2174
    %2176 = vmatprep.mubr.bf16.mxu0 0
    %2177 = vmatmul.mubr.bf16.gmra.mrb[0].mxu0 %v1586
    %v2178 = vpop.f32.mrb[0].mxu0
    %v2179 = vadd.f32 %v1632, %v2178
    %v2180 = vpop.f32.mrb[0].mxu0
    %v2181 = vadd.f32 %v1636, %v2180
    %v2182 = vpop.f32.mrb[0].mxu0
    %v2183 = vadd.f32 %v1632, %v2182
    %v2184 = vpop.f32.mrb[0].mxu0
    %v2185 = vadd.f32 %v1636, %v2184
    %2186 = vdwg.mxu0
    %v2187 = vmax.f32 %v1836, 0.0
    %v2188 = vmax.f32 %v1838, 0.0
    %v2189 = vmax.f32 %v2029, 0.0
    %v2190 = vmax.f32 %v2031, 0.0
    %v2191 = vmax.f32 %v1840, 0.0
    %v2192 = vmax.f32 %v1842, 0.0
    %v2193 = vmax.f32 %v2033, 0.0
    %v2194 = vmax.f32 %v2035, 0.0
    %v2195 = vmax.f32 %v1846, 0.0
    %v2196 = vmax.f32 %v1848, 0.0
    %v2197 = vmax.f32 %v2039, 0.0
    %v2198 = vmax.f32 %v2041, 0.0
    %v2199 = vmax.f32 %v1850, 0.0
    %v2200 = vmax.f32 %v1852, 0.0
    %v2201 = vmax.f32 %v2043, 0.0
    %v2202 = vmax.f32 %v2045, 0.0
    %v2203 = vmax.f32 %v1856, 0.0
    %v2204 = vmax.f32 %v1858, 0.0
    %v2205 = vmax.f32 %v2049, 0.0
    %v2206 = vmax.f32 %v2051, 0.0
    %v2207 = vmax.f32 %v1860, 0.0
    %v2208 = vmax.f32 %v1862, 0.0
    %v2209 = vmax.f32 %v2053, 0.0
    %v2210 = vmax.f32 %v2055, 0.0
    %v2211 = vmax.f32 %v1866, 0.0
    %v2212 = vmax.f32 %v1868, 0.0
    %v2213 = vmax.f32 %v2059, 0.0
    %v2214 = vmax.f32 %v2061, 0.0
    %v2215 = vmax.f32 %v1870, 0.0
    %v2216 = vmax.f32 %v1872, 0.0
    %v2217 = vmax.f32 %v2063, 0.0
    %v2218 = vmax.f32 %v2065, 0.0
    %v2219 = vmax.f32 %v1876, 0.0
    %v2220 = vmax.f32 %v1878, 0.0
    %v2221 = vmax.f32 %v2069, 0.0
    %v2222 = vmax.f32 %v2071, 0.0
    %v2223 = vmax.f32 %v1880, 0.0
    %v2224 = vmax.f32 %v1882, 0.0
    %v2225 = vmax.f32 %v2073, 0.0
    %v2226 = vmax.f32 %v2075, 0.0
    %v2227 = vmax.f32 %v1886, 0.0
    %v2228 = vmax.f32 %v1888, 0.0
    %v2229 = vmax.f32 %v2079, 0.0
    %v2230 = vmax.f32 %v2081, 0.0
    %v2231 = vmax.f32 %v1890, 0.0
    %v2232 = vmax.f32 %v1892, 0.0
    %v2233 = vmax.f32 %v2083, 0.0
    %v2234 = vmax.f32 %v2085, 0.0
    %v2235 = vmax.f32 %v1896, 0.0
    %v2236 = vmax.f32 %v1898, 0.0
    %v2237 = vmax.f32 %v2089, 0.0
    %v2238 = vmax.f32 %v2091, 0.0
    %v2239 = vmax.f32 %v1900, 0.0
    %v2240 = vmax.f32 %v1902, 0.0
    %v2241 = vmax.f32 %v2093, 0.0
    %v2242 = vmax.f32 %v2095, 0.0
    %v2243 = vmax.f32 %v1906, 0.0
    %v2244 = vmax.f32 %v1908, 0.0
    %v2245 = vmax.f32 %v2099, 0.0
    %v2246 = vmax.f32 %v2101, 0.0
    %v2247 = vmax.f32 %v1910, 0.0
    %v2248 = vmax.f32 %v1912, 0.0
    %v2249 = vmax.f32 %v2103, 0.0
    %v2250 = vmax.f32 %v2105, 0.0
    %v2251 = vmax.f32 %v1916, 0.0
    %v2252 = vmax.f32 %v1918, 0.0
    %v2253 = vmax.f32 %v2109, 0.0
    %v2254 = vmax.f32 %v2111, 0.0
    %v2255 = vmax.f32 %v1920, 0.0
    %v2256 = vmax.f32 %v1922, 0.0
    %v2257 = vmax.f32 %v2113, 0.0
    %v2258 = vmax.f32 %v2115, 0.0
    %v2259 = vmax.f32 %v1926, 0.0
    %v2260 = vmax.f32 %v1928, 0.0
    %v2261 = vmax.f32 %v2119, 0.0
    %v2262 = vmax.f32 %v2121, 0.0
    %v2263 = vmax.f32 %v1930, 0.0
    %v2264 = vmax.f32 %v1932, 0.0
    %v2265 = vmax.f32 %v2123, 0.0
    %v2266 = vmax.f32 %v2125, 0.0
    %v2267 = vmax.f32 %v1936, 0.0
    %v2268 = vmax.f32 %v1938, 0.0
    %v2269 = vmax.f32 %v2129, 0.0
    %v2270 = vmax.f32 %v2131, 0.0
    %v2271 = vmax.f32 %v1940, 0.0
    %v2272 = vmax.f32 %v1942, 0.0
    %v2273 = vmax.f32 %v2133, 0.0
    %v2274 = vmax.f32 %v2135, 0.0
    %v2275 = vmax.f32 %v1946, 0.0
    %v2276 = vmax.f32 %v1948, 0.0
    %v2277 = vmax.f32 %v2139, 0.0
    %v2278 = vmax.f32 %v2141, 0.0
    %v2279 = vmax.f32 %v1950, 0.0
    %v2280 = vmax.f32 %v1952, 0.0
    %v2281 = vmax.f32 %v2143, 0.0
    %v2282 = vmax.f32 %v2145, 0.0
    %v2283 = vmax.f32 %v1956, 0.0
    %v2284 = vmax.f32 %v1958, 0.0
    %v2285 = vmax.f32 %v2149, 0.0
    %v2286 = vmax.f32 %v2151, 0.0
    %v2287 = vmax.f32 %v1960, 0.0
    %v2288 = vmax.f32 %v1962, 0.0
    %v2289 = vmax.f32 %v2153, 0.0
    %v2290 = vmax.f32 %v2155, 0.0
    %v2291 = vmax.f32 %v1966, 0.0
    %v2292 = vmax.f32 %v1968, 0.0
    %v2293 = vmax.f32 %v2159, 0.0
    %v2294 = vmax.f32 %v2161, 0.0
    %v2295 = vmax.f32 %v1970, 0.0
    %v2296 = vmax.f32 %v1972, 0.0
    %v2297 = vmax.f32 %v2163, 0.0
    %v2298 = vmax.f32 %v2165, 0.0
    %v2299 = vmax.f32 %v1976, 0.0
    %v2300 = vmax.f32 %v1978, 0.0
    %v2301 = vmax.f32 %v2169, 0.0
    %v2302 = vmax.f32 %v2171, 0.0
    %v2303 = vmax.f32 %v1980, 0.0
    %v2304 = vmax.f32 %v1982, 0.0
    %v2305 = vmax.f32 %v2173, 0.0
    %v2306 = vmax.f32 %v2175, 0.0
    %v2307 = vmax.f32 %v1986, 0.0
    %v2308 = vmax.f32 %v1988, 0.0
    %v2309 = vmax.f32 %v2179, 0.0
    %v2310 = vmax.f32 %v2181, 0.0
    %v2311 = vmax.f32 %v1990, 0.0
    %v2312 = vmax.f32 %v1992, 0.0
    %v2313 = vmax.f32 %v2183, 0.0
    %v2314 = vmax.f32 %v2185, 0.0
    %v2315 = vpack.c.bf16 %v2191, %v2187
    %v2316 = vpack.c.bf16 %v2192, %v2188
    %v2317 = vpack.c.bf16 %v2193, %v2189
    %v2318 = vpack.c.bf16 %v2194, %v2190
    %v2319 = vpack.c.bf16 %v2199, %v2195
    %v2320 = vpack.c.bf16 %v2200, %v2196
    %v2321 = vpack.c.bf16 %v2201, %v2197
    %v2322 = vpack.c.bf16 %v2202, %v2198
    %v2323 = vpack.c.bf16 %v2207, %v2203
    %v2324 = vpack.c.bf16 %v2208, %v2204
    %v2325 = vpack.c.bf16 %v2209, %v2205
    %v2326 = vpack.c.bf16 %v2210, %v2206
    %v2327 = vpack.c.bf16 %v2215, %v2211
    %v2328 = vpack.c.bf16 %v2216, %v2212
    %v2329 = vpack.c.bf16 %v2217, %v2213
    %v2330 = vpack.c.bf16 %v2218, %v2214
    %v2331 = vpack.c.bf16 %v2223, %v2219
    %v2332 = vpack.c.bf16 %v2224, %v2220
    %v2333 = vpack.c.bf16 %v2225, %v2221
    %v2334 = vpack.c.bf16 %v2226, %v2222
    %v2335 = vpack.c.bf16 %v2231, %v2227
    %v2336 = vpack.c.bf16 %v2232, %v2228
    %v2337 = vpack.c.bf16 %v2233, %v2229
    %v2338 = vpack.c.bf16 %v2234, %v2230
    %v2339 = vpack.c.bf16 %v2239, %v2235
    %v2340 = vpack.c.bf16 %v2240, %v2236
    %v2341 = vpack.c.bf16 %v2241, %v2237
    %v2342 = vpack.c.bf16 %v2242, %v2238
    %v2343 = vpack.c.bf16 %v2247, %v2243
    %v2344 = vpack.c.bf16 %v2248, %v2244
    %v2345 = vpack.c.bf16 %v2249, %v2245
    %v2346 = vpack.c.bf16 %v2250, %v2246
    %v2347 = vpack.c.bf16 %v2255, %v2251
    %v2348 = vpack.c.bf16 %v2256, %v2252
    %v2349 = vpack.c.bf16 %v2257, %v2253
    %v2350 = vpack.c.bf16 %v2258, %v2254
    %v2351 = vpack.c.bf16 %v2263, %v2259
    %v2352 = vpack.c.bf16 %v2264, %v2260
    %v2353 = vpack.c.bf16 %v2265, %v2261
    %v2354 = vpack.c.bf16 %v2266, %v2262
    %v2355 = vpack.c.bf16 %v2271, %v2267
    %v2356 = vpack.c.bf16 %v2272, %v2268
    %v2357 = vpack.c.bf16 %v2273, %v2269
    %v2358 = vpack.c.bf16 %v2274, %v2270
    %v2359 = vpack.c.bf16 %v2279, %v2275
    %v2360 = vpack.c.bf16 %v2280, %v2276
    %v2361 = vpack.c.bf16 %v2281, %v2277
    %v2362 = vpack.c.bf16 %v2282, %v2278
    %v2363 = vpack.c.bf16 %v2287, %v2283
    %v2364 = vpack.c.bf16 %v2288, %v2284
    %v2365 = vpack.c.bf16 %v2289, %v2285
    %v2366 = vpack.c.bf16 %v2290, %v2286
    %v2367 = vpack.c.bf16 %v2295, %v2291
    %v2368 = vpack.c.bf16 %v2296, %v2292
    %v2369 = vpack.c.bf16 %v2297, %v2293
    %v2370 = vpack.c.bf16 %v2298, %v2294
    %v2371 = vpack.c.bf16 %v2303, %v2299
    %v2372 = vpack.c.bf16 %v2304, %v2300
    %v2373 = vpack.c.bf16 %v2305, %v2301
    %v2374 = vpack.c.bf16 %v2306, %v2302
    %v2375 = vpack.c.bf16 %v2311, %v2307
    %v2376 = vpack.c.bf16 %v2312, %v2308
    %v2377 = vpack.c.bf16 %v2313, %v2309
    %v2378 = vpack.c.bf16 %v2314, %v2310
    %v2379 = vld [vmem:[#allocation11] sm:$0xf]
    %v2380 = vld [vmem:[#allocation11 + $0x4] sm:$0xf]
    %v2381 = vld [vmem:[#allocation11 + $0x8] sm:$0xf]
    %v2382 = vld [vmem:[#allocation11 + $0xc] sm:$0xf]
    %v2383 = vld [vmem:[#allocation11 + $0x10] sm:$0xf]
    %v2384 = vld [vmem:[#allocation11 + $0x14] sm:$0xf]
    %v2385 = vld [vmem:[#allocation11 + $0x18] sm:$0xf]
    %v2386 = vld [vmem:[#allocation11 + $0x1c] sm:$0xf]
    %v2387 = vld [vmem:[#allocation11 + $0x20] sm:$0xf]
    %v2388 = vld [vmem:[#allocation11 + $0x24] sm:$0xf]
    %v2389 = vld [vmem:[#allocation11 + $0x28] sm:$0xf]
    %v2390 = vld [vmem:[#allocation11 + $0x2c] sm:$0xf]
    %v2391 = vld [vmem:[#allocation11 + $0x30] sm:$0xf]
    %v2392 = vld [vmem:[#allocation11 + $0x34] sm:$0xf]
    %v2393 = vld [vmem:[#allocation11 + $0x38] sm:$0xf]
    %v2394 = vld [vmem:[#allocation11 + $0x3c] sm:$0xf]
    %v2395 = vld [vmem:[#allocation11 + $0x40] sm:$0xf]
    %v2396 = vld [vmem:[#allocation11 + $0x44] sm:$0xf]
    %v2397 = vld [vmem:[#allocation11 + $0x48] sm:$0xf]
    %v2398 = vld [vmem:[#allocation11 + $0x4c] sm:$0xf]
    %v2399 = vld [vmem:[#allocation11 + $0x50] sm:$0xf]
    %v2400 = vld [vmem:[#allocation11 + $0x54] sm:$0xf]
    %v2401 = vld [vmem:[#allocation11 + $0x58] sm:$0xf]
    %v2402 = vld [vmem:[#allocation11 + $0x5c] sm:$0xf]
    %v2403 = vld [vmem:[#allocation11 + $0x60] sm:$0xf]
    %v2404 = vld [vmem:[#allocation11 + $0x64] sm:$0xf]
    %v2405 = vld [vmem:[#allocation11 + $0x68] sm:$0xf]
    %v2406 = vld [vmem:[#allocation11 + $0x6c] sm:$0xf]
    %v2407 = vld [vmem:[#allocation11 + $0x70] sm:$0xf]
    %v2408 = vld [vmem:[#allocation11 + $0x74] sm:$0xf]
    %v2409 = vld [vmem:[#allocation11 + $0x78] sm:$0xf]
    %v2410 = vld [vmem:[#allocation11 + $0x7c] sm:$0xf]
    %v2411 = vld [vmem:[#allocation11 + $0x80] sm:$0xf]
    %v2412 = vld [vmem:[#allocation11 + $0x84] sm:$0xf]
    %v2413 = vld [vmem:[#allocation11 + $0x88] sm:$0xf]
    %v2414 = vld [vmem:[#allocation11 + $0x8c] sm:$0xf]
    %v2415 = vld [vmem:[#allocation11 + $0x90] sm:$0xf]
    %v2416 = vld [vmem:[#allocation11 + $0x94] sm:$0xf]
    %v2417 = vld [vmem:[#allocation11 + $0x98] sm:$0xf]
    %v2418 = vld [vmem:[#allocation11 + $0x9c] sm:$0xf]
    %v2419 = vld [vmem:[#allocation11 + $0xa0] sm:$0xf]
    %v2420 = vld [vmem:[#allocation11 + $0xa4] sm:$0xf]
    %v2421 = vld [vmem:[#allocation11 + $0xa8] sm:$0xf]
    %v2422 = vld [vmem:[#allocation11 + $0xac] sm:$0xf]
    %v2423 = vld [vmem:[#allocation11 + $0xb0] sm:$0xf]
    %v2424 = vld [vmem:[#allocation11 + $0xb4] sm:$0xf]
    %v2425 = vld [vmem:[#allocation11 + $0xb8] sm:$0xf]
    %v2426 = vld [vmem:[#allocation11 + $0xbc] sm:$0xf]
    %v2427 = vld [vmem:[#allocation11 + $0xc0] sm:$0xf]
    %v2428 = vld [vmem:[#allocation11 + $0xc4] sm:$0xf]
    %v2429 = vld [vmem:[#allocation11 + $0xc8] sm:$0xf]
    %v2430 = vld [vmem:[#allocation11 + $0xcc] sm:$0xf]
    %v2431 = vld [vmem:[#allocation11 + $0xd0] sm:$0xf]
    %v2432 = vld [vmem:[#allocation11 + $0xd4] sm:$0xf]
    %v2433 = vld [vmem:[#allocation11 + $0xd8] sm:$0xf]
    %v2434 = vld [vmem:[#allocation11 + $0xdc] sm:$0xf]
    %v2435 = vld [vmem:[#allocation11 + $0xe0] sm:$0xf]
    %v2436 = vld [vmem:[#allocation11 + $0xe4] sm:$0xf]
    %v2437 = vld [vmem:[#allocation11 + $0xe8] sm:$0xf]
    %v2438 = vld [vmem:[#allocation11 + $0xec] sm:$0xf]
    %v2439 = vld [vmem:[#allocation11 + $0xf0] sm:$0xf]
    %v2440 = vld [vmem:[#allocation11 + $0xf4] sm:$0xf]
    %v2441 = vld [vmem:[#allocation11 + $0xf8] sm:$0xf]
    %v2442 = vld [vmem:[#allocation11 + $0xfc] sm:$0xf]
    %v2443 = vld [vmem:[%s8] sm:$0x1]
    %v2445 = vlaneseq
    %v2446 = vshrl.u32 %v2445, 7
    %v2447 = vsub.s32 0, %v2446
    %v2448 = vrot.slane %v2443, %v2447
    %v2514 = vunpack.c.l.b16 %v2379
    %v2515 = vunpack.c.l.b16 %v2380
    %v2516 = vunpack.c.l.b16 %v2381
    %v2517 = vunpack.c.l.b16 %v2382
    %v2518 = vunpack.c.l.b16 %v2383
    %v2519 = vunpack.c.l.b16 %v2384
    %v2520 = vunpack.c.l.b16 %v2385
    %v2521 = vunpack.c.l.b16 %v2386
    %v2522 = vunpack.c.l.b16 %v2387
    %v2523 = vunpack.c.l.b16 %v2388
    %v2524 = vunpack.c.l.b16 %v2389
    %v2525 = vunpack.c.l.b16 %v2390
    %v2526 = vunpack.c.l.b16 %v2391
    %v2527 = vunpack.c.l.b16 %v2392
    %v2528 = vunpack.c.l.b16 %v2393
    %v2529 = vunpack.c.l.b16 %v2394
    %v2530 = vunpack.c.l.b16 %v2395
    %v2531 = vunpack.c.l.b16 %v2396
    %v2532 = vunpack.c.l.b16 %v2397
    %v2533 = vunpack.c.l.b16 %v2398
    %v2534 = vunpack.c.l.b16 %v2399
    %v2535 = vunpack.c.l.b16 %v2400
    %v2536 = vunpack.c.l.b16 %v2401
    %v2537 = vunpack.c.l.b16 %v2402
    %v2538 = vunpack.c.l.b16 %v2403
    %v2539 = vunpack.c.l.b16 %v2404
    %v2540 = vunpack.c.l.b16 %v2405
    %v2541 = vunpack.c.l.b16 %v2406
    %v2542 = vunpack.c.l.b16 %v2407
    %v2543 = vunpack.c.l.b16 %v2408
    %v2544 = vunpack.c.l.b16 %v2409
    %v2545 = vunpack.c.l.b16 %v2410
    %v2546 = vunpack.c.l.b16 %v2411
    %v2547 = vunpack.c.l.b16 %v2412
    %v2548 = vunpack.c.l.b16 %v2413
    %v2549 = vunpack.c.l.b16 %v2414
    %v2550 = vunpack.c.l.b16 %v2415
    %v2551 = vunpack.c.l.b16 %v2416
    %v2552 = vunpack.c.l.b16 %v2417
    %v2553 = vunpack.c.l.b16 %v2418
    %v2554 = vunpack.c.l.b16 %v2419
    %v2555 = vunpack.c.l.b16 %v2420
    %v2556 = vunpack.c.l.b16 %v2421
    %v2557 = vunpack.c.l.b16 %v2422
    %v2558 = vunpack.c.l.b16 %v2423
    %v2559 = vunpack.c.l.b16 %v2424
    %v2560 = vunpack.c.l.b16 %v2425
    %v2561 = vunpack.c.l.b16 %v2426
    %v2562 = vunpack.c.l.b16 %v2427
    %v2563 = vunpack.c.l.b16 %v2428
    %v2564 = vunpack.c.l.b16 %v2429
    %v2565 = vunpack.c.l.b16 %v2430
    %v2566 = vunpack.c.l.b16 %v2431
    %v2567 = vunpack.c.l.b16 %v2432
    %v2568 = vunpack.c.l.b16 %v2433
    %v2569 = vunpack.c.l.b16 %v2434
    %v2570 = vunpack.c.l.b16 %v2435
    %v2571 = vunpack.c.l.b16 %v2436
    %v2572 = vunpack.c.l.b16 %v2437
    %v2573 = vunpack.c.l.b16 %v2438
    %v2574 = vunpack.c.l.b16 %v2439
    %v2575 = vunpack.c.l.b16 %v2440
    %v2576 = vunpack.c.l.b16 %v2441
    %v2577 = vunpack.c.l.b16 %v2442
    %v2578 = vpack.c.b16 %v2515, %v2514
    %v2579 = vpack.c.b16 %v2517, %v2516
    %v2580 = vpack.c.b16 %v2519, %v2518
    %v2581 = vpack.c.b16 %v2521, %v2520
    %v2582 = vpack.c.b16 %v2523, %v2522
    %v2583 = vpack.c.b16 %v2525, %v2524
    %v2584 = vpack.c.b16 %v2527, %v2526
    %v2585 = vpack.c.b16 %v2529, %v2528
    %v2586 = vpack.c.b16 %v2531, %v2530
    %v2587 = vpack.c.b16 %v2533, %v2532
    %v2588 = vpack.c.b16 %v2535, %v2534
    %v2589 = vpack.c.b16 %v2537, %v2536
    %v2590 = vpack.c.b16 %v2539, %v2538
    %v2591 = vpack.c.b16 %v2541, %v2540
    %v2592 = vpack.c.b16 %v2543, %v2542
    %v2593 = vpack.c.b16 %v2545, %v2544
    %v2594 = vpack.c.b16 %v2547, %v2546
    %v2595 = vpack.c.b16 %v2549, %v2548
    %v2596 = vpack.c.b16 %v2551, %v2550
    %v2597 = vpack.c.b16 %v2553, %v2552
    %v2598 = vpack.c.b16 %v2555, %v2554
    %v2599 = vpack.c.b16 %v2557, %v2556
    %v2600 = vpack.c.b16 %v2559, %v2558
    %v2601 = vpack.c.b16 %v2561, %v2560
    %v2602 = vpack.c.b16 %v2563, %v2562
    %v2603 = vpack.c.b16 %v2565, %v2564
    %v2604 = vpack.c.b16 %v2567, %v2566
    %v2605 = vpack.c.b16 %v2569, %v2568
    %v2606 = vpack.c.b16 %v2571, %v2570
    %v2607 = vpack.c.b16 %v2573, %v2572
    %v2608 = vpack.c.b16 %v2575, %v2574
    %v2609 = vpack.c.b16 %v2577, %v2576
    %2642 = vmatprep.subr.bf16.mxu0 0
    %2643 = vmatpush1.bf16.msra.mxu0 %v2578
    %2644 = vmatprep.subr.bf16.mxu0 0
    %2645 = vmatpush1.bf16.msra.mxu0 %v2579
    %2646 = vmatprep.subr.bf16.mxu0 0
    %2647 = vmatpush1.bf16.msra.mxu0 %v2580
    %2648 = vmatprep.subr.bf16.mxu0 0
    %2649 = vmatpush1.bf16.msra.mxu0 %v2581
    %2650 = vmatprep.subr.bf16.mxu0 0
    %2651 = vmatpush1.bf16.msra.mxu0 %v2582
    %2652 = vmatprep.subr.bf16.mxu0 0
    %2653 = vmatpush1.bf16.msra.mxu0 %v2583
    %2654 = vmatprep.subr.bf16.mxu0 0
    %2655 = vmatpush1.bf16.msra.mxu0 %v2584
    %2656 = vmatprep.subr.bf16.mxu0 0
    %2657 = vmatpush1.bf16.msra.mxu0 %v2585
    %2658 = vmatprep.subr.bf16.mxu0 0
    %2659 = vmatpush1.bf16.msra.mxu0 %v2586
    %2660 = vmatprep.subr.bf16.mxu0 0
    %2661 = vmatpush1.bf16.msra.mxu0 %v2587
    %2662 = vmatprep.subr.bf16.mxu0 0
    %2663 = vmatpush1.bf16.msra.mxu0 %v2588
    %2664 = vmatprep.subr.bf16.mxu0 0
    %2665 = vmatpush1.bf16.msra.mxu0 %v2589
    %2666 = vmatprep.subr.bf16.mxu0 0
    %2667 = vmatpush1.bf16.msra.mxu0 %v2590
    %2668 = vmatprep.subr.bf16.mxu0 0
    %2669 = vmatpush1.bf16.msra.mxu0 %v2591
    %2670 = vmatprep.subr.bf16.mxu0 0
    %2671 = vmatpush1.bf16.msra.mxu0 %v2592
    %2672 = vmatprep.subr.bf16.mxu0 0
    %2673 = vmatpush1.bf16.msra.mxu0 %v2593
    %2674 = vmatprep.mubr.bf16.mxu0 %v2316
    %2675 = vmatmul.mubr.bf16.gmra.mrb[0].mxu0 %v2315
    %v2676 = vpop.f32.mrb[0].mxu0
    %v2677 = vadd.f32 %v2448, %v2676
    %v2678 = vpop.f32.mrb[0].mxu0
    %v2679 = vpop.f32.mrb[0].mxu0
    %v2680 = vadd.f32 %v2448, %v2679
    %v2681 = vpop.f32.mrb[0].mxu0
    %2682 = vmatprep.mubr.bf16.mxu0 %v2320
    %2683 = vmatmul.mubr.bf16.gmra.mrb[0].mxu0 %v2319
    %v2684 = vpop.f32.mrb[0].mxu0
    %v2685 = vadd.f32 %v2448, %v2684
    %v2686 = vpop.f32.mrb[0].mxu0
    %v2687 = vpop.f32.mrb[0].mxu0
    %v2688 = vadd.f32 %v2448, %v2687
    %v2689 = vpop.f32.mrb[0].mxu0
    %2690 = vmatprep.mubr.bf16.mxu0 %v2324
    %2691 = vmatmul.mubr.bf16.gmra.mrb[0].mxu0 %v2323
    %v2692 = vpop.f32.mrb[0].mxu0
    %v2693 = vadd.f32 %v2448, %v2692
    %v2694 = vpop.f32.mrb[0].mxu0
    %v2695 = vpop.f32.mrb[0].mxu0
    %v2696 = vadd.f32 %v2448, %v2695
    %v2697 = vpop.f32.mrb[0].mxu0
    %2698 = vmatprep.mubr.bf16.mxu0 %v2328
    %2699 = vmatmul.mubr.bf16.gmra.mrb[0].mxu0 %v2327
    %v2700 = vpop.f32.mrb[0].mxu0
    %v2701 = vadd.f32 %v2448, %v2700
    %v2702 = vpop.f32.mrb[0].mxu0
    %v2703 = vpop.f32.mrb[0].mxu0
    %v2704 = vadd.f32 %v2448, %v2703
    %v2705 = vpop.f32.mrb[0].mxu0
    %2706 = vmatprep.mubr.bf16.mxu0 %v2332
    %2707 = vmatmul.mubr.bf16.gmra.mrb[0].mxu0 %v2331
    %v2708 = vpop.f32.mrb[0].mxu0
    %v2709 = vadd.f32 %v2448, %v2708
    %v2710 = vpop.f32.mrb[0].mxu0
    %v2711 = vpop.f32.mrb[0].mxu0
    %v2712 = vadd.f32 %v2448, %v2711
    %v2713 = vpop.f32.mrb[0].mxu0
    %2714 = vmatprep.mubr.bf16.mxu0 %v2336
    %2715 = vmatmul.mubr.bf16.gmra.mrb[0].mxu0 %v2335
    %v2716 = vpop.f32.mrb[0].mxu0
    %v2717 = vadd.f32 %v2448, %v2716
    %v2718 = vpop.f32.mrb[0].mxu0
    %v2719 = vpop.f32.mrb[0].mxu0
    %v2720 = vadd.f32 %v2448, %v2719
    %v2721 = vpop.f32.mrb[0].mxu0
    %2722 = vmatprep.mubr.bf16.mxu0 %v2340
    %2723 = vmatmul.mubr.bf16.gmra.mrb[0].mxu0 %v2339
    %v2724 = vpop.f32.mrb[0].mxu0
    %v2725 = vadd.f32 %v2448, %v2724
    %v2726 = vpop.f32.mrb[0].mxu0
    %v2727 = vpop.f32.mrb[0].mxu0
    %v2728 = vadd.f32 %v2448, %v2727
    %v2729 = vpop.f32.mrb[0].mxu0
    %2730 = vmatprep.mubr.bf16.mxu0 %v2344
    %2731 = vmatmul.mubr.bf16.gmra.mrb[0].mxu0 %v2343
    %v2732 = vpop.f32.mrb[0].mxu0
    %v2733 = vadd.f32 %v2448, %v2732
    %v2734 = vpop.f32.mrb[0].mxu0
    %v2735 = vpop.f32.mrb[0].mxu0
    %v2736 = vadd.f32 %v2448, %v2735
    %v2737 = vpop.f32.mrb[0].mxu0
    %2738 = vmatprep.mubr.bf16.mxu0 %v2348
    %2739 = vmatmul.mubr.bf16.gmra.mrb[0].mxu0 %v2347
    %v2740 = vpop.f32.mrb[0].mxu0
    %v2741 = vadd.f32 %v2448, %v2740
    %v2742 = vpop.f32.mrb[0].mxu0
    %v2743 = vpop.f32.mrb[0].mxu0
    %v2744 = vadd.f32 %v2448, %v2743
    %v2745 = vpop.f32.mrb[0].mxu0
    %2746 = vmatprep.mubr.bf16.mxu0 %v2352
    %2747 = vmatmul.mubr.bf16.gmra.mrb[0].mxu0 %v2351
    %v2748 = vpop.f32.mrb[0].mxu0
    %v2749 = vadd.f32 %v2448, %v2748
    %v2750 = vpop.f32.mrb[0].mxu0
    %v2751 = vpop.f32.mrb[0].mxu0
    %v2752 = vadd.f32 %v2448, %v2751
    %v2753 = vpop.f32.mrb[0].mxu0
    %2754 = vmatprep.mubr.bf16.mxu0 %v2356
    %2755 = vmatmul.mubr.bf16.gmra.mrb[0].mxu0 %v2355
    %v2756 = vpop.f32.mrb[0].mxu0
    %v2757 = vadd.f32 %v2448, %v2756
    %v2758 = vpop.f32.mrb[0].mxu0
    %v2759 = vpop.f32.mrb[0].mxu0
    %v2760 = vadd.f32 %v2448, %v2759
    %v2761 = vpop.f32.mrb[0].mxu0
    %2762 = vmatprep.mubr.bf16.mxu0 %v2360
    %2763 = vmatmul.mubr.bf16.gmra.mrb[0].mxu0 %v2359
    %v2764 = vpop.f32.mrb[0].mxu0
    %v2765 = vadd.f32 %v2448, %v2764
    %v2766 = vpop.f32.mrb[0].mxu0
    %v2767 = vpop.f32.mrb[0].mxu0
    %v2768 = vadd.f32 %v2448, %v2767
    %v2769 = vpop.f32.mrb[0].mxu0
    %2770 = vmatprep.mubr.bf16.mxu0 %v2364
    %2771 = vmatmul.mubr.bf16.gmra.mrb[0].mxu0 %v2363
    %v2772 = vpop.f32.mrb[0].mxu0
    %v2773 = vadd.f32 %v2448, %v2772
    %v2774 = vpop.f32.mrb[0].mxu0
    %v2775 = vpop.f32.mrb[0].mxu0
    %v2776 = vadd.f32 %v2448, %v2775
    %v2777 = vpop.f32.mrb[0].mxu0
    %2778 = vmatprep.mubr.bf16.mxu0 %v2368
    %2779 = vmatmul.mubr.bf16.gmra.mrb[0].mxu0 %v2367
    %v2780 = vpop.f32.mrb[0].mxu0
    %v2781 = vadd.f32 %v2448, %v2780
    %v2782 = vpop.f32.mrb[0].mxu0
    %v2783 = vpop.f32.mrb[0].mxu0
    %v2784 = vadd.f32 %v2448, %v2783
    %v2785 = vpop.f32.mrb[0].mxu0
    %2786 = vmatprep.mubr.bf16.mxu0 %v2372
    %2787 = vmatmul.mubr.bf16.gmra.mrb[0].mxu0 %v2371
    %v2788 = vpop.f32.mrb[0].mxu0
    %v2789 = vadd.f32 %v2448, %v2788
    %v2790 = vpop.f32.mrb[0].mxu0
    %v2791 = vpop.f32.mrb[0].mxu0
    %v2792 = vadd.f32 %v2448, %v2791
    %v2793 = vpop.f32.mrb[0].mxu0
    %2794 = vmatprep.mubr.bf16.mxu0 %v2376
    %2795 = vmatmul.mubr.bf16.gmra.mrb[0].mxu0 %v2375
    %v2796 = vpop.f32.mrb[0].mxu0
    %v2797 = vadd.f32 %v2448, %v2796
    %v2798 = vpop.f32.mrb[0].mxu0
    %v2799 = vpop.f32.mrb[0].mxu0
    %v2800 = vadd.f32 %v2448, %v2799
    %v2801 = vpop.f32.mrb[0].mxu0
    %2802 = vdwg.mxu0
    %2803 = vmatprep.subr.bf16.mxu0 0
    %2804 = vmatpush1.bf16.msra.mxu0 %v2594
    %2805 = vmatprep.subr.bf16.mxu0 0
    %2806 = vmatpush1.bf16.msra.mxu0 %v2595
    %2807 = vmatprep.subr.bf16.mxu0 0
    %2808 = vmatpush1.bf16.msra.mxu0 %v2596
    %2809 = vmatprep.subr.bf16.mxu0 0
    %2810 = vmatpush1.bf16.msra.mxu0 %v2597
    %2811 = vmatprep.subr.bf16.mxu0 0
    %2812 = vmatpush1.bf16.msra.mxu0 %v2598
    %2813 = vmatprep.subr.bf16.mxu0 0
    %2814 = vmatpush1.bf16.msra.mxu0 %v2599
    %2815 = vmatprep.subr.bf16.mxu0 0
    %2816 = vmatpush1.bf16.msra.mxu0 %v2600
    %2817 = vmatprep.subr.bf16.mxu0 0
    %2818 = vmatpush1.bf16.msra.mxu0 %v2601
    %2819 = vmatprep.subr.bf16.mxu0 0
    %2820 = vmatpush1.bf16.msra.mxu0 %v2602
    %2821 = vmatprep.subr.bf16.mxu0 0
    %2822 = vmatpush1.bf16.msra.mxu0 %v2603
    %2823 = vmatprep.subr.bf16.mxu0 0
    %2824 = vmatpush1.bf16.msra.mxu0 %v2604
    %2825 = vmatprep.subr.bf16.mxu0 0
    %2826 = vmatpush1.bf16.msra.mxu0 %v2605
    %2827 = vmatprep.subr.bf16.mxu0 0
    %2828 = vmatpush1.bf16.msra.mxu0 %v2606
    %2829 = vmatprep.subr.bf16.mxu0 0
    %2830 = vmatpush1.bf16.msra.mxu0 %v2607
    %2831 = vmatprep.subr.bf16.mxu0 0
    %2832 = vmatpush1.bf16.msra.mxu0 %v2608
    %2833 = vmatprep.subr.bf16.mxu0 0
    %2834 = vmatpush1.bf16.msra.mxu0 %v2609
    %2835 = vmatprep.mubr.bf16.mxu0 %v2318
    %2836 = vmatmul.mubr.bf16.gmra.mrb[0].mxu0 %v2317
    %v2837 = vpop.f32.mrb[0].mxu0
    %v2838 = vadd.f32 %v2677, %v2837
    %v2839 = vpop.f32.mrb[0].mxu0
    %v2840 = vpop.f32.mrb[0].mxu0
    %v2841 = vadd.f32 %v2680, %v2840
    %v2842 = vpop.f32.mrb[0].mxu0
    %2843 = vmatprep.mubr.bf16.mxu0 %v2322
    %2844 = vmatmul.mubr.bf16.gmra.mrb[0].mxu0 %v2321
    %v2845 = vpop.f32.mrb[0].mxu0
    %v2846 = vadd.f32 %v2685, %v2845
    %v2847 = vpop.f32.mrb[0].mxu0
    %v2848 = vpop.f32.mrb[0].mxu0
    %v2849 = vadd.f32 %v2688, %v2848
    %v2850 = vpop.f32.mrb[0].mxu0
    %2851 = vmatprep.mubr.bf16.mxu0 %v2326
    %2852 = vmatmul.mubr.bf16.gmra.mrb[0].mxu0 %v2325
    %v2853 = vpop.f32.mrb[0].mxu0
    %v2854 = vadd.f32 %v2693, %v2853
    %v2855 = vpop.f32.mrb[0].mxu0
    %v2856 = vpop.f32.mrb[0].mxu0
    %v2857 = vadd.f32 %v2696, %v2856
    %v2858 = vpop.f32.mrb[0].mxu0
    %2859 = vmatprep.mubr.bf16.mxu0 %v2330
    %2860 = vmatmul.mubr.bf16.gmra.mrb[0].mxu0 %v2329
    %v2861 = vpop.f32.mrb[0].mxu0
    %v2862 = vadd.f32 %v2701, %v2861
    %v2863 = vpop.f32.mrb[0].mxu0
    %v2864 = vpop.f32.mrb[0].mxu0
    %v2865 = vadd.f32 %v2704, %v2864
    %v2866 = vpop.f32.mrb[0].mxu0
    %2867 = vmatprep.mubr.bf16.mxu0 %v2334
    %2868 = vmatmul.mubr.bf16.gmra.mrb[0].mxu0 %v2333
    %v2869 = vpop.f32.mrb[0].mxu0
    %v2870 = vadd.f32 %v2709, %v2869
    %v2871 = vpop.f32.mrb[0].mxu0
    %v2872 = vpop.f32.mrb[0].mxu0
    %v2873 = vadd.f32 %v2712, %v2872
    %v2874 = vpop.f32.mrb[0].mxu0
    %2875 = vmatprep.mubr.bf16.mxu0 %v2338
    %2876 = vmatmul.mubr.bf16.gmra.mrb[0].mxu0 %v2337
    %v2877 = vpop.f32.mrb[0].mxu0
    %v2878 = vadd.f32 %v2717, %v2877
    %v2879 = vpop.f32.mrb[0].mxu0
    %v2880 = vpop.f32.mrb[0].mxu0
    %v2881 = vadd.f32 %v2720, %v2880
    %v2882 = vpop.f32.mrb[0].mxu0
    %2883 = vmatprep.mubr.bf16.mxu0 %v2342
    %2884 = vmatmul.mubr.bf16.gmra.mrb[0].mxu0 %v2341
    %v2885 = vpop.f32.mrb[0].mxu0
    %v2886 = vadd.f32 %v2725, %v2885
    %v2887 = vpop.f32.mrb[0].mxu0
    %v2888 = vpop.f32.mrb[0].mxu0
    %v2889 = vadd.f32 %v2728, %v2888
    %v2890 = vpop.f32.mrb[0].mxu0
    %2891 = vmatprep.mubr.bf16.mxu0 %v2346
    %2892 = vmatmul.mubr.bf16.gmra.mrb[0].mxu0 %v2345
    %v2893 = vpop.f32.mrb[0].mxu0
    %v2894 = vadd.f32 %v2733, %v2893
    %v2895 = vpop.f32.mrb[0].mxu0
    %v2896 = vpop.f32.mrb[0].mxu0
    %v2897 = vadd.f32 %v2736, %v2896
    %v2898 = vpop.f32.mrb[0].mxu0
    %2899 = vmatprep.mubr.bf16.mxu0 %v2350
    %2900 = vmatmul.mubr.bf16.gmra.mrb[0].mxu0 %v2349
    %v2901 = vpop.f32.mrb[0].mxu0
    %v2902 = vadd.f32 %v2741, %v2901
    %v2903 = vpop.f32.mrb[0].mxu0
    %v2904 = vpop.f32.mrb[0].mxu0
    %v2905 = vadd.f32 %v2744, %v2904
    %v2906 = vpop.f32.mrb[0].mxu0
    %2907 = vmatprep.mubr.bf16.mxu0 %v2354
    %2908 = vmatmul.mubr.bf16.gmra.mrb[0].mxu0 %v2353
    %v2909 = vpop.f32.mrb[0].mxu0
    %v2910 = vadd.f32 %v2749, %v2909
    %v2911 = vpop.f32.mrb[0].mxu0
    %v2912 = vpop.f32.mrb[0].mxu0
    %v2913 = vadd.f32 %v2752, %v2912
    %v2914 = vpop.f32.mrb[0].mxu0
    %2915 = vmatprep.mubr.bf16.mxu0 %v2358
    %2916 = vmatmul.mubr.bf16.gmra.mrb[0].mxu0 %v2357
    %v2917 = vpop.f32.mrb[0].mxu0
    %v2918 = vadd.f32 %v2757, %v2917
    %v2919 = vpop.f32.mrb[0].mxu0
    %v2920 = vpop.f32.mrb[0].mxu0
    %v2921 = vadd.f32 %v2760, %v2920
    %v2922 = vpop.f32.mrb[0].mxu0
    %2923 = vmatprep.mubr.bf16.mxu0 %v2362
    %2924 = vmatmul.mubr.bf16.gmra.mrb[0].mxu0 %v2361
    %v2925 = vpop.f32.mrb[0].mxu0
    %v2926 = vadd.f32 %v2765, %v2925
    %v2927 = vpop.f32.mrb[0].mxu0
    %v2928 = vpop.f32.mrb[0].mxu0
    %v2929 = vadd.f32 %v2768, %v2928
    %v2930 = vpop.f32.mrb[0].mxu0
    %2931 = vmatprep.mubr.bf16.mxu0 %v2366
    %2932 = vmatmul.mubr.bf16.gmra.mrb[0].mxu0 %v2365
    %v2933 = vpop.f32.mrb[0].mxu0
    %v2934 = vadd.f32 %v2773, %v2933
    %v2935 = vpop.f32.mrb[0].mxu0
    %v2936 = vpop.f32.mrb[0].mxu0
    %v2937 = vadd.f32 %v2776, %v2936
    %v2938 = vpop.f32.mrb[0].mxu0
    %2939 = vmatprep.mubr.bf16.mxu0 %v2370
    %2940 = vmatmul.mubr.bf16.gmra.mrb[0].mxu0 %v2369
    %v2941 = vpop.f32.mrb[0].mxu0
    %v2942 = vadd.f32 %v2781, %v2941
    %v2943 = vpop.f32.mrb[0].mxu0
    %v2944 = vpop.f32.mrb[0].mxu0
    %v2945 = vadd.f32 %v2784, %v2944
    %v2946 = vpop.f32.mrb[0].mxu0
    %2947 = vmatprep.mubr.bf16.mxu0 %v2374
    %2948 = vmatmul.mubr.bf16.gmra.mrb[0].mxu0 %v2373
    %v2949 = vpop.f32.mrb[0].mxu0
    %v2950 = vadd.f32 %v2789, %v2949
    %v2951 = vpop.f32.mrb[0].mxu0
    %v2952 = vpop.f32.mrb[0].mxu0
    %v2953 = vadd.f32 %v2792, %v2952
    %v2954 = vpop.f32.mrb[0].mxu0
    %2955 = vmatprep.mubr.bf16.mxu0 %v2378
    %2956 = vmatmul.mubr.bf16.gmra.mrb[0].mxu0 %v2377
    %v2957 = vpop.f32.mrb[0].mxu0
    %v2958 = vadd.f32 %v2797, %v2957
    %v2959 = vpop.f32.mrb[0].mxu0
    %v2960 = vpop.f32.mrb[0].mxu0
    %v2961 = vadd.f32 %v2800, %v2960
    %v2962 = vpop.f32.mrb[0].mxu0
    %2963 = vdwg.mxu0
    %v2964 = vtanh.pop %v2838
    %v2965 = vtanh.pop %v2841
    %v2966 = vtanh.pop %v2846
    %v2967 = vtanh.pop %v2849
    %v2968 = vtanh.pop %v2854
    %v2969 = vtanh.pop %v2857
    %v2970 = vtanh.pop %v2862
    %v2971 = vtanh.pop %v2865
    %v2972 = vtanh.pop %v2870
    %v2973 = vtanh.pop %v2873
    %v2974 = vtanh.pop %v2878
    %v2975 = vtanh.pop %v2881
    %v2976 = vtanh.pop %v2886
    %v2977 = vtanh.pop %v2889
    %v2978 = vtanh.pop %v2894
    %v2979 = vtanh.pop %v2897
    %v2980 = vtanh.pop %v2902
    %v2981 = vtanh.pop %v2905
    %v2982 = vtanh.pop %v2910
    %v2983 = vtanh.pop %v2913
    %v2984 = vtanh.pop %v2918
    %v2985 = vtanh.pop %v2921
    %v2986 = vtanh.pop %v2926
    %v2987 = vtanh.pop %v2929
    %v2988 = vtanh.pop %v2934
    %v2989 = vtanh.pop %v2937
    %v2990 = vtanh.pop %v2942
    %v2991 = vtanh.pop %v2945
    %v2992 = vtanh.pop %v2950
    %v2993 = vtanh.pop %v2953
    %v2994 = vtanh.pop %v2958
    %v2995 = vtanh.pop %v2961
    %2996 = vst [vmem:[#allocation13] sm:$0xff] %v2964
    %2997 = vst [vmem:[#allocation13 + $0x8] sm:$0xff] %v2965
    %2998 = vst [vmem:[#allocation13 + $0x10] sm:$0xff] %v2966
    %2999 = vst [vmem:[#allocation13 + $0x18] sm:$0xff] %v2967
    %3000 = vst [vmem:[#allocation13 + $0x20] sm:$0xff] %v2968
    %3001 = vst [vmem:[#allocation13 + $0x28] sm:$0xff] %v2969
    %3002 = vst [vmem:[#allocation13 + $0x30] sm:$0xff] %v2970
    %3003 = vst [vmem:[#allocation13 + $0x38] sm:$0xff] %v2971
    %3004 = vst [vmem:[#allocation13 + $0x40] sm:$0xff] %v2972
    %3005 = vst [vmem:[#allocation13 + $0x48] sm:$0xff] %v2973
    %3006 = vst [vmem:[#allocation13 + $0x50] sm:$0xff] %v2974
    %3007 = vst [vmem:[#allocation13 + $0x58] sm:$0xff] %v2975
    %3008 = vst [vmem:[#allocation13 + $0x60] sm:$0xff] %v2976
    %3009 = vst [vmem:[#allocation13 + $0x68] sm:$0xff] %v2977
    %3010 = vst [vmem:[#allocation13 + $0x70] sm:$0xff] %v2978
    %3011 = vst [vmem:[#allocation13 + $0x78] sm:$0xff] %v2979
    %3012 = vst [vmem:[#allocation13 + $0x80] sm:$0xff] %v2980
    %3013 = vst [vmem:[#allocation13 + $0x88] sm:$0xff] %v2981
    %3014 = vst [vmem:[#allocation13 + $0x90] sm:$0xff] %v2982
    %3015 = vst [vmem:[#allocation13 + $0x98] sm:$0xff] %v2983
    %3016 = vst [vmem:[#allocation13 + $0xa0] sm:$0xff] %v2984
    %3017 = vst [vmem:[#allocation13 + $0xa8] sm:$0xff] %v2985
    %3018 = vst [vmem:[#allocation13 + $0xb0] sm:$0xff] %v2986
    %3019 = vst [vmem:[#allocation13 + $0xb8] sm:$0xff] %v2987
    %3020 = vst [vmem:[#allocation13 + $0xc0] sm:$0xff] %v2988
    %3021 = vst [vmem:[#allocation13 + $0xc8] sm:$0xff] %v2989
    %3022 = vst [vmem:[#allocation13 + $0xd0] sm:$0xff] %v2990
    %3023 = vst [vmem:[#allocation13 + $0xd8] sm:$0xff] %v2991
    %3024 = vst [vmem:[#allocation13 + $0xe0] sm:$0xff] %v2992
    %3025 = vst [vmem:[#allocation13 + $0xe8] sm:$0xff] %v2993
    %3026 = vst [vmem:[#allocation13 + $0xf0] sm:$0xff] %v2994
    %3027 = vst [vmem:[#allocation13 + $0xf8] sm:$0xff] %v2995
    // Predicated region
    $region62: #{autoencoder_forward.1} parent=1 // pred_check
      _
    $region63: #{autoencoder_forward.1} parent=1 // pred_check_branch
      %3029 = sbr.rel (0) target = $region65
    $region64: #{autoencoder_forward.1} parent=1 // pred_region
      %s3031 = ssub.s32 4096, 4096
      %3032 = vsyncadd [#allocation4], %s3031
      %s3033 = sshll.u32 [#allocation13], 4
      %s3034 = int_to_ptr.vmem [resolvable:$true] %s3033
      %3039 = dma.vmem_to_hbm [thread:$0]  %s3034, 4096, %s9, [#allocation4], 128, 128, 8
    $region65: #{autoencoder_forward.1} parent=1 // pred_fallthru
      _
    // Predicated region
    $region66: #{autoencoder_forward.1} parent=1 // pred_check
      _
    $region67: #{autoencoder_forward.1} parent=1 // pred_check_branch
      %3041 = sbr.rel (0) target = $region69
    $region68: #{autoencoder_forward.1} parent=1 // pred_region
      %3042 = dma.done [#allocation4], 4096
    $region69: #{autoencoder_forward.1} parent=1 // pred_fallthru
      _
    %3043 = vsyncpa [#allocation3], 1
    %3044 = vsyncpa [#allocation6], 1
    %3045 = vsyncpa [#allocation9], 1
    %3046 = vsyncpa [#allocation12], 1
    %3047 = vsyncpa [#allocation4], 1

</llo_original>
